<compile_context>
chip_gen: v6e
topology: v6e:2x2x1
jax: 0.10.0
libtpu: 0.0.40
codegen_flags: <defaults>
</compile_context>

<pallas_src>
import jax
import jax.numpy as jnp
from jax import lax
from jax.experimental import pallas as pl
from jax.experimental.pallas import tpu as pltpu

# ----------------------------- config (small, synthetic) --------------------
HIDDEN = 128
N_HEADS = 4
N_KV_HEADS = 2
HEAD_DIM = HIDDEN // N_HEADS          # 32
N_REP = N_HEADS // N_KV_HEADS         # 2
NQ = N_HEADS * HEAD_DIM               # 128
NKV = N_KV_HEADS * HEAD_DIM           # 64
INTERMEDIATE = 256
RMS_EPS = 1e-6
ROPE_THETA = 10000.0
RESCALE_HIDDEN_STATES = True
SCALE_FACTOR = 1.0
SCALE_GAP = 1.0

# MXU operand dtype.  f32 keeps exact parity with the reference module (and is
# the right VPU/EUP choice on v5e).  Set to jnp.bfloat16 for the v6e/v7x MXU
# fast path — accumulation stays f32 via preferred_element_type, and all
# RMSNorm / softmax / SiLU / cosine math is kept in f32 regardless.
COMPUTE_DTYPE = jnp.float32

# Scoped-VMEM cap: safe on v5e/v6e (128 MiB phys) and v7x (64 MiB phys).
VMEM_LIMIT = 32 * 1024 * 1024


# ======================= fused decoder-layer kernel (per batch) ==============
def _decoder_layer_kernel(x_ref, cos_ref, sin_ref, coeff_ref,
                          ln_in_ref, wq_ext_ref, wkv_ext_ref, wo_ref,
                          ln_post_ref, w_gu_ref, w_down_ref,
                          out_ref, sim_ref):
    seq = x_ref.shape[1]

    x = x_ref[0].astype(jnp.float32)                          # [S, H]
    residual1 = x

    # ---- input RMSNorm ----
    var = jnp.mean(x * x, axis=-1, keepdims=True)
    xn = x * lax.rsqrt(var + RMS_EPS) * ln_in_ref[...].astype(jnp.float32)
    xc = xn.astype(COMPUTE_DTYPE)

    # ---- QKV projections with RoPE rotation (and 1/sqrt(d)) folded into W ----
    qq = jnp.dot(xc, wq_ext_ref[...].astype(COMPUTE_DTYPE),
                 preferred_element_type=jnp.float32)          # [S, 2*NQ]
    kkv = jnp.dot(xc, wkv_ext_ref[...].astype(COMPUTE_DTYPE),
                  preferred_element_type=jnp.float32)         # [S, 2*NKV + NKV]

    # Compact [S, D] cos/sin, broadcast across heads in-kernel.
    cos = cos_ref[...].astype(jnp.float32)                    # [S, D]
    sin = sin_ref[...].astype(jnp.float32)
    cos_q = jnp.concatenate([cos] * N_HEADS, axis=1)          # [S, NQ]
    sin_q = jnp.concatenate([sin] * N_HEADS, axis=1)
    cos_k = jnp.concatenate([cos] * N_KV_HEADS, axis=1)       # [S, NKV]
    sin_k = jnp.concatenate([sin] * N_KV_HEADS, axis=1)

    q = qq[:, :NQ] * cos_q + qq[:, NQ:] * sin_q               # [S, NQ] (pre-scaled)
    k = kkv[:, :NKV] * cos_k + kkv[:, NKV:2 * NKV] * sin_k    # [S, NKV]
    v = kkv[:, 2 * NKV:]                                      # [S, NKV]

    # ---- causal GQA attention (KV heads shared, never materialized) ----
    rowpos = lax.broadcasted_iota(jnp.int32, (seq, seq), 0)
    colpos = lax.broadcasted_iota(jnp.int32, (seq, seq), 1)
    neg = jnp.float32(jnp.finfo(jnp.float32).min)
    causal_bias = jnp.where(rowpos >= colpos, 0.0, neg)       # additive mask, built once

    ctx_cols = []
    for g in range(N_KV_HEADS):
        kg = k[:, g * HEAD_DIM:(g + 1) * HEAD_DIM]            # [S, D]
        vg = v[:, g * HEAD_DIM:(g + 1) * HEAD_DIM]            # [S, D]
        kgc = kg.astype(COMPUTE_DTYPE)
        vgc = vg.astype(COMPUTE_DTYPE)
        for r in range(N_REP):
            h_idx = g * N_REP + r
            qh = q[:, h_idx * HEAD_DIM:(h_idx + 1) * HEAD_DIM]
            sc = jnp.einsum('md,kd->mk', qh.astype(COMPUTE_DTYPE), kgc,
                            preferred_element_type=jnp.float32) + causal_bias
            m = jnp.max(sc, axis=-1, keepdims=True)
            e = jnp.exp(sc - m)
            p = e * pl.reciprocal(jnp.sum(e, axis=-1, keepdims=True), approx=True)
            ctx_cols.append(jnp.dot(p.astype(COMPUTE_DTYPE), vgc,
                                    preferred_element_type=jnp.float32))   # [S, D]
    ctx = jnp.concatenate(ctx_cols, axis=1)                   # [S, NQ]  head-major

    # ---- O-projection: single K=128 contraction + residual add ----
    attn_out = jnp.dot(ctx.astype(COMPUTE_DTYPE), wo_ref[...].astype(COMPUTE_DTYPE),
                       preferred_element_type=jnp.float32)    # [S, H]
    hs = residual1 + attn_out                                 # post-attn residual

    # ---- post RMSNorm + SwiGLU MLP (gate|up packed) ----
    var2 = jnp.mean(hs * hs, axis=-1, keepdims=True)
    hn = (hs * lax.rsqrt(var2 + RMS_EPS)
          * ln_post_ref[...].astype(jnp.float32)).astype(COMPUTE_DTYPE)
    gu = jnp.dot(hn, w_gu_ref[...].astype(COMPUTE_DTYPE),
                 preferred_element_type=jnp.float32)          # [S, 2*INTER]
    g_act = gu[:, :INTERMEDIATE]
    u_act = gu[:, INTERMEDIATE:]
    act = (g_act * jax.nn.sigmoid(g_act)) * u_act             # SiLU(gate) * up
    mlp_out = jnp.dot(act.astype(COMPUTE_DTYPE), w_down_ref[...].astype(COMPUTE_DTYPE),
                      preferred_element_type=jnp.float32)     # [S, H]

    # ---- residual / MoD masked combine: out = residual + coeff * mlp_out ----
    coeff = coeff_ref[0].astype(jnp.float32)                  # [S, 1]
    out_ref[...] = (hs + coeff * mlp_out)[None].astype(out_ref.dtype)

    # ---- cosine similarity on the un-gated transform (all tokens; both torch
    #      branches compute it this way) ----
    transformed = hs + mlp_out
    dot_rt = jnp.sum(hs * transformed, axis=-1, keepdims=True)
    na = jnp.sqrt(jnp.sum(hs * hs, axis=-1, keepdims=True))
    nb = jnp.sqrt(jnp.sum(transformed * transformed, axis=-1, keepdims=True))
    eps = jnp.float32(1e-8)
    sims = dot_rt / (jnp.maximum(na, eps) * jnp.maximum(nb, eps))   # [S, 1]
    # Tiny (S floats/step) output; width-1 store kept for lowering robustness.
    sim_ref[...] = sims[None]


# ----------------------------- glue helpers ----------------------------------
def _rope_block_diag(n_heads):
    # x @ R == rotate_half(x), applied independently within each head block.
    half = HEAD_DIM // 2
    eye = jnp.eye(half, dtype=jnp.float32)
    zero = jnp.zeros((half, half), jnp.float32)
    r_head = jnp.block([[zero, eye], [-eye, zero]])
    return jnp.kron(jnp.eye(n_heads, dtype=jnp.float32), r_head)


def _rope_tables(s):
    pos = jnp.arange(s, dtype=jnp.float32)
    inv_freq = 1.0 / (ROPE_THETA ** (jnp.arange(0, HEAD_DIM, 2, dtype=jnp.float32)
                                     / HEAD_DIM))
    freqs = pos[:, None] * inv_freq[None, :]
    emb = jnp.concatenate([freqs, freqs], axis=-1)            # [S, D]
    return jnp.cos(emb), jnp.sin(emb)


# ----------------------------- decoder layer forward --------------------------
def decoder_layer_forward(params, hidden_states, topk_mask=None,
                          topk_scores=None, calculate_similarity=False):
    """Mirrors MistralMoDExAttnDecoderLayer.forward (no cache, no attn output).

    topk_mask / topk_scores, if given, are dense [B, S]; the dense mask*score
    combine is equivalent to torch's boolean fancy-index scatter because
    RMSNorm/MLP are per-token.  Returns (hidden_states [B,S,H], sims or None).
    """
    b, s, h = hidden_states.shape
    dt = hidden_states.dtype

    # RoPE tables (compact, per-position) and rotation folded into weights.
    cos, sin = _rope_tables(s)
    scale = 1.0 / (HEAD_DIM ** 0.5)
    rq = _rope_block_diag(N_HEADS)
    rk = _rope_block_diag(N_KV_HEADS)
    wq, wk, wv = params["q"], params["k"], params["v"]
    wq_ext = jnp.concatenate([wq, wq @ rq], axis=1) * scale   # [H, 2*NQ]
    wkv_ext = jnp.concatenate([wk, wk @ rk, wv], axis=1)      # [H, 3*NKV]
    w_gu = jnp.concatenate([params["gate"], params["up"]], axis=1)  # [H, 2*INTER]

    # MoD coefficient (1 for the dense path; mask * rescaled score otherwise).
    if topk_mask is None or topk_scores is None:
        coeff = jnp.ones((b, s, 1), jnp.float32)
    else:
        mask_f = topk_mask.astype(jnp.float32)
        if RESCALE_HIDDEN_STATES:
            sc = 0.5 * SCALE_FACTOR + (topk_scores.astype(jnp.float32) - 0.5) * SCALE_GAP
            coeff = (mask_f * sc)[..., None]
        else:
            coeff = mask_f[..., None]

    full2 = lambda bi: (0, 0)
    batch3 = lambda bi: (bi, 0, 0)

    out, sims = pl.pallas_call(
        _decoder_layer_kernel,
        grid=(b,),
        in_specs=[
            pl.BlockSpec((1, s, h), batch3),                  # hidden_states
            pl.BlockSpec((s, HEAD_DIM), full2),               # cos
            pl.BlockSpec((s, HEAD_DIM), full2),               # sin
            pl.BlockSpec((1, s, 1), batch3),                  # MoD coeff
            pl.BlockSpec((1, h), full2),                      # input_ln weight
            pl.BlockSpec((h, 2 * NQ), full2),                 # [Wq | Wq@R] * scale
            pl.BlockSpec((h, 3 * NKV), full2),                # [Wk | Wk@R | Wv]
            pl.BlockSpec((NQ, h), full2),                     # Wo
            pl.BlockSpec((1, h), full2),                      # post_ln weight
            pl.BlockSpec((h, 2 * INTERMEDIATE), full2),       # [gate | up]
            pl.BlockSpec((INTERMEDIATE, h), full2),           # down
        ],
        out_specs=(
            pl.BlockSpec((1, s, h), batch3),
            pl.BlockSpec((1, s, 1), batch3),
        ),
        out_shape=(
            jax.ShapeDtypeStruct((b, s, h), dt),
            jax.ShapeDtypeStruct((b, s, 1), jnp.float32),
        ),
        compiler_params=pltpu.CompilerParams(
            dimension_semantics=("parallel",),
            vmem_limit_bytes=VMEM_LIMIT),
    )(hidden_states, cos, sin, coeff,
      params["input_ln"].reshape(1, -1), wq_ext, wkv_ext, params["o"],
      params["post_ln"].reshape(1, -1), w_gu, params["down"])

    sims_out = sims.reshape(b, s) if calculate_similarity else None
    return out, sims_out


# ----------------------------- deterministic params ---------------------------
def init_params(key):
    ks = jax.random.split(key, 7)
    scale = 0.02
    return {
        "input_ln": jnp.ones((HIDDEN,), jnp.float32),
        "post_ln": jnp.ones((HIDDEN,), jnp.float32),
        "q": scale * jax.random.normal(ks[0], (HIDDEN, NQ), jnp.float32),
        "k": scale * jax.random.normal(ks[1], (HIDDEN, NKV), jnp.float32),
        "v": scale * jax.random.normal(ks[2], (HIDDEN, NKV), jnp.float32),
        "o": scale * jax.random.normal(ks[3], (NQ, HIDDEN), jnp.float32),
        "gate": scale * jax.random.normal(ks[4], (HIDDEN, INTERMEDIATE), jnp.float32),
        "up": scale * jax.random.normal(ks[5], (HIDDEN, INTERMEDIATE), jnp.float32),
        "down": scale * jax.random.normal(ks[6], (INTERMEDIATE, HIDDEN), jnp.float32),
    }


if __name__ == "__main__":
    root = jax.random.PRNGKey(0)
    kp, kx, km, ksc = jax.random.split(root, 4)

    params = init_params(kp)
    B, S = 2, 8
    hidden = jax.random.normal(kx, (B, S, HIDDEN), jnp.float32)

    # Dense path (topk_mask is None) with similarity calculation.
    fwd_dense = jax.jit(lambda p, x: decoder_layer_forward(p, x, calculate_similarity=True))
    out, sims = fwd_dense(params, hidden)
    jax.block_until_ready(out)
    jax.block_until_ready(sims)
    assert out.shape == (B, S, HIDDEN) and sims.shape == (B, S)

    # Mixture-of-Depths path (dense-mask equivalent of the boolean gather).
    topk_mask = jax.random.uniform(km, (B, S)) > 0.5
    topk_scores = jax.random.uniform(ksc, (B, S))
    fwd_mod = jax.jit(lambda p, x, m, sc: decoder_layer_forward(
        p, x, topk_mask=m, topk_scores=sc, calculate_similarity=True))
    out_mod, sims_mod = fwd_mod(params, hidden, topk_mask, topk_scores)
    jax.block_until_ready(out_mod)
    jax.block_until_ready(sims_mod)
    assert out_mod.shape == (B, S, HIDDEN) and sims_mod.shape == (B, S)

    print("KERNEL_OK")
</pallas_src>

<mosaic_0001>
module attributes {stable_mosaic.version = 11 : i64} {
  func.func @_decoder_layer_kernel(%arg0: i32, %arg1: memref<1x8x128xf32, #tpu.memory_space<vmem>>, %arg2: memref<8x32xf32, #tpu.memory_space<vmem>>, %arg3: memref<8x32xf32, #tpu.memory_space<vmem>>, %arg4: memref<1x8x1xf32, #tpu.memory_space<vmem>>, %arg5: memref<1x128xf32, #tpu.memory_space<vmem>>, %arg6: memref<128x256xf32, #tpu.memory_space<vmem>>, %arg7: memref<128x192xf32, #tpu.memory_space<vmem>>, %arg8: memref<128x128xf32, #tpu.memory_space<vmem>>, %arg9: memref<1x128xf32, #tpu.memory_space<vmem>>, %arg10: memref<128x512xf32, #tpu.memory_space<vmem>>, %arg11: memref<256x128xf32, #tpu.memory_space<vmem>>, %arg12: memref<1x8x128xf32, #tpu.memory_space<vmem>>, %arg13: memref<1x8x1xf32, #tpu.memory_space<vmem>>) attributes {dimension_semantics = [#tpu.dimension_semantics<parallel>], iteration_bounds = array<i64: 2>, scalar_prefetch = 0 : i64, scratch_operands = 0 : i64, tpu.core_type = #tpu.core_type<tc>, window_params = [{transform_indices = @transform_0, window_bounds = array<i64: 1, 8, 128>}, {pipeline_mode = #tpu.pipeline_mode<synchronous>, transform_indices = @transform_1, window_bounds = array<i64: 8, 32>}, {pipeline_mode = #tpu.pipeline_mode<synchronous>, transform_indices = @transform_2, window_bounds = array<i64: 8, 32>}, {transform_indices = @transform_3, window_bounds = array<i64: 1, 8, 1>}, {pipeline_mode = #tpu.pipeline_mode<synchronous>, transform_indices = @transform_4, window_bounds = array<i64: 1, 128>}, {pipeline_mode = #tpu.pipeline_mode<synchronous>, transform_indices = @transform_5, window_bounds = array<i64: 128, 256>}, {pipeline_mode = #tpu.pipeline_mode<synchronous>, transform_indices = @transform_6, window_bounds = array<i64: 128, 192>}, {pipeline_mode = #tpu.pipeline_mode<synchronous>, transform_indices = @transform_7, window_bounds = array<i64: 128, 128>}, {pipeline_mode = #tpu.pipeline_mode<synchronous>, transform_indices = @transform_8, window_bounds = array<i64: 1, 128>}, {pipeline_mode = #tpu.pipeline_mode<synchronous>, transform_indices = @transform_9, window_bounds = array<i64: 128, 512>}, {pipeline_mode = #tpu.pipeline_mode<synchronous>, transform_indices = @transform_10, window_bounds = array<i64: 256, 128>}, {transform_indices = @transform_11, window_bounds = array<i64: 1, 8, 128>}, {transform_indices = @transform_12, window_bounds = array<i64: 1, 8, 1>}]} {
    %c0 = arith.constant 0 : index
    %c0_0 = arith.constant 0 : index
    %c0_1 = arith.constant 0 : index
    %0 = vector.load %arg1[%c0, %c0_0, %c0_1] : memref<1x8x128xf32, #tpu.memory_space<vmem>>, vector<1x8x128xf32>
    %1 = vector.shape_cast %0 : vector<1x8x128xf32> to vector<8x128xf32>
    %2 = arith.mulf %1, %1 : vector<8x128xf32>
    %cst = arith.constant dense<0.000000e+00> : vector<8xf32>
    %3 = vector.multi_reduction <add>, %2, %cst [1] : vector<8x128xf32> to vector<8xf32>
    %4 = vector.shape_cast %3 : vector<8xf32> to vector<8x1xf32>
    %cst_2 = arith.constant 1.280000e+02 : f32
    %5 = vector.broadcast %cst_2 : f32 to vector<8x1xf32>
    %6 = arith.divf %4, %5 : vector<8x1xf32>
    %cst_3 = arith.constant 9.99999997E-7 : f32
    %7 = vector.broadcast %cst_3 : f32 to vector<8x1xf32>
    %8 = arith.addf %6, %7 : vector<8x1xf32>
    %9 = math.rsqrt %8 : vector<8x1xf32>
    %10 = vector.broadcast %9 : vector<8x1xf32> to vector<8x128xf32>
    %11 = arith.mulf %1, %10 : vector<8x128xf32>
    %c0_4 = arith.constant 0 : index
    %c0_5 = arith.constant 0 : index
    %12 = vector.load %arg5[%c0_4, %c0_5] : memref<1x128xf32, #tpu.memory_space<vmem>>, vector<1x128xf32>
    %13 = vector.broadcast %12 : vector<1x128xf32> to vector<8x128xf32>
    %14 = arith.mulf %11, %13 : vector<8x128xf32>
    %c0_6 = arith.constant 0 : index
    %c0_7 = arith.constant 0 : index
    %15 = vector.load %arg6[%c0_6, %c0_7] : memref<128x256xf32, #tpu.memory_space<vmem>>, vector<128x256xf32>
    %cst_8 = arith.constant dense<0.000000e+00> : vector<8x256xf32>
    %16 = tpu.matmul %14, %15, %cst_8 {dimension_numbers = #tpu.dot_dimension_numbers<[1], [0], [0], [1], [0, 0, 1, 1], [], []>} : vector<8x128xf32>, vector<128x256xf32>, vector<8x256xf32> -> vector<8x256xf32>
    %c0_9 = arith.constant 0 : index
    %c0_10 = arith.constant 0 : index
    %17 = vector.load %arg7[%c0_9, %c0_10] : memref<128x192xf32, #tpu.memory_space<vmem>>, vector<128x192xf32>
    %cst_11 = arith.constant dense<0.000000e+00> : vector<8x192xf32>
    %18 = tpu.matmul %14, %17, %cst_11 {dimension_numbers = #tpu.dot_dimension_numbers<[1], [0], [0], [1], [0, 0, 1, 1], [], []>} : vector<8x128xf32>, vector<128x192xf32>, vector<8x192xf32> -> vector<8x192xf32>
    %c0_12 = arith.constant 0 : index
    %c0_13 = arith.constant 0 : index
    %19 = vector.load %arg2[%c0_12, %c0_13] : memref<8x32xf32, #tpu.memory_space<vmem>>, vector<8x32xf32>
    %c0_14 = arith.constant 0 : index
    %c0_15 = arith.constant 0 : index
    %20 = vector.load %arg3[%c0_14, %c0_15] : memref<8x32xf32, #tpu.memory_space<vmem>>, vector<8x32xf32>
    %21 = tpu.concatenate %19, %19, %19, %19 in 1 : vector<8x32xf32>, vector<8x32xf32>, vector<8x32xf32>, vector<8x32xf32> -> vector<8x128xf32>
    %22 = tpu.concatenate %20, %20, %20, %20 in 1 : vector<8x32xf32>, vector<8x32xf32>, vector<8x32xf32>, vector<8x32xf32> -> vector<8x128xf32>
    %23 = tpu.concatenate %19, %19 in 1 : vector<8x32xf32>, vector<8x32xf32> -> vector<8x64xf32>
    %24 = tpu.concatenate %20, %20 in 1 : vector<8x32xf32>, vector<8x32xf32> -> vector<8x64xf32>
    %25 = vector.extract_strided_slice %16 {offsets = [0, 0], sizes = [8, 128], strides = [1, 1]} : vector<8x256xf32> to vector<8x128xf32>
    %26 = arith.mulf %25, %21 : vector<8x128xf32>
    %27 = vector.extract_strided_slice %16 {offsets = [0, 128], sizes = [8, 128], strides = [1, 1]} : vector<8x256xf32> to vector<8x128xf32>
    %28 = arith.mulf %27, %22 : vector<8x128xf32>
    %29 = arith.addf %26, %28 : vector<8x128xf32>
    %30 = vector.extract_strided_slice %18 {offsets = [0, 0], sizes = [8, 64], strides = [1, 1]} : vector<8x192xf32> to vector<8x64xf32>
    %31 = arith.mulf %30, %23 : vector<8x64xf32>
    %32 = vector.extract_strided_slice %18 {offsets = [0, 64], sizes = [8, 64], strides = [1, 1]} : vector<8x192xf32> to vector<8x64xf32>
    %33 = arith.mulf %32, %24 : vector<8x64xf32>
    %34 = arith.addf %31, %33 : vector<8x64xf32>
    %35 = vector.extract_strided_slice %18 {offsets = [0, 128], sizes = [8, 64], strides = [1, 1]} : vector<8x192xf32> to vector<8x64xf32>
    %36 = tpu.iota {dimensions = array<i32: 0>} : vector<8x8xi32>
    %37 = tpu.iota {dimensions = array<i32: 1>} : vector<8x8xi32>
    %38 = arith.cmpi sge, %36, %37 : vector<8x8xi32>
    %cst_16 = arith.constant 0.000000e+00 : f32
    %cst_17 = arith.constant -3.40282347E+38 : f32
    %39 = vector.broadcast %cst_16 : f32 to vector<8x8xf32>
    %40 = vector.broadcast %cst_17 : f32 to vector<8x8xf32>
    %41 = arith.select %38, %39, %40 : vector<8x8xi1>, vector<8x8xf32>
    %42 = vector.extract_strided_slice %34 {offsets = [0, 0], sizes = [8, 32], strides = [1, 1]} : vector<8x64xf32> to vector<8x32xf32>
    %43 = vector.extract_strided_slice %35 {offsets = [0, 0], sizes = [8, 32], strides = [1, 1]} : vector<8x64xf32> to vector<8x32xf32>
    %44 = vector.extract_strided_slice %29 {offsets = [0, 0], sizes = [8, 32], strides = [1, 1]} : vector<8x128xf32> to vector<8x32xf32>
    "tpu.trace_start"() <{level = 10 : i32, message = "md,kd->mk"}> : () -> ()
    %cst_18 = arith.constant dense<0.000000e+00> : vector<8x8xf32>
    %45 = tpu.matmul %44, %42, %cst_18 {dimension_numbers = #tpu.dot_dimension_numbers<[1], [1], [0], [0], [0, 0, 1, 0], [], []>} : vector<8x32xf32>, vector<8x32xf32>, vector<8x8xf32> -> vector<8x8xf32>
    "tpu.trace_stop"() : () -> ()
    %46 = arith.addf %45, %41 : vector<8x8xf32>
    %cst_19 = arith.constant dense<0xFF800000> : vector<8xf32>
    %47 = vector.multi_reduction <maximumf>, %46, %cst_19 [1] : vector<8x8xf32> to vector<8xf32>
    %48 = vector.shape_cast %47 : vector<8xf32> to vector<8x1xf32>
    %49 = vector.broadcast %48 : vector<8x1xf32> to vector<8x8xf32>
    %50 = arith.subf %46, %49 : vector<8x8xf32>
    %51 = math.exp %50 : vector<8x8xf32>
    %cst_20 = arith.constant dense<0.000000e+00> : vector<8xf32>
    %52 = vector.multi_reduction <add>, %51, %cst_20 [1] : vector<8x8xf32> to vector<8xf32>
    %53 = vector.shape_cast %52 : vector<8xf32> to vector<8x1xf32>
    %54 = tpu.reciprocal %53 {approx = true} : vector<8x1xf32> -> vector<8x1xf32>
    %55 = vector.broadcast %54 : vector<8x1xf32> to vector<8x8xf32>
    %56 = arith.mulf %51, %55 : vector<8x8xf32>
    %cst_21 = arith.constant dense<0.000000e+00> : vector<8x32xf32>
    %57 = tpu.matmul %56, %43, %cst_21 {dimension_numbers = #tpu.dot_dimension_numbers<[1], [0], [0], [1], [0, 0, 1, 1], [], []>} : vector<8x8xf32>, vector<8x32xf32>, vector<8x32xf32> -> vector<8x32xf32>
    %58 = vector.extract_strided_slice %29 {offsets = [0, 32], sizes = [8, 32], strides = [1, 1]} : vector<8x128xf32> to vector<8x32xf32>
    "tpu.trace_start"() <{level = 10 : i32, message = "md,kd->mk"}> : () -> ()
    %cst_22 = arith.constant dense<0.000000e+00> : vector<8x8xf32>
    %59 = tpu.matmul %58, %42, %cst_22 {dimension_numbers = #tpu.dot_dimension_numbers<[1], [1], [0], [0], [0, 0, 1, 0], [], []>} : vector<8x32xf32>, vector<8x32xf32>, vector<8x8xf32> -> vector<8x8xf32>
    "tpu.trace_stop"() : () -> ()
    %60 = arith.addf %59, %41 : vector<8x8xf32>
    %cst_23 = arith.constant dense<0xFF800000> : vector<8xf32>
    %61 = vector.multi_reduction <maximumf>, %60, %cst_23 [1] : vector<8x8xf32> to vector<8xf32>
    %62 = vector.shape_cast %61 : vector<8xf32> to vector<8x1xf32>
    %63 = vector.broadcast %62 : vector<8x1xf32> to vector<8x8xf32>
    %64 = arith.subf %60, %63 : vector<8x8xf32>
    %65 = math.exp %64 : vector<8x8xf32>
    %cst_24 = arith.constant dense<0.000000e+00> : vector<8xf32>
    %66 = vector.multi_reduction <add>, %65, %cst_24 [1] : vector<8x8xf32> to vector<8xf32>
    %67 = vector.shape_cast %66 : vector<8xf32> to vector<8x1xf32>
    %68 = tpu.reciprocal %67 {approx = true} : vector<8x1xf32> -> vector<8x1xf32>
    %69 = vector.broadcast %68 : vector<8x1xf32> to vector<8x8xf32>
    %70 = arith.mulf %65, %69 : vector<8x8xf32>
    %cst_25 = arith.constant dense<0.000000e+00> : vector<8x32xf32>
    %71 = tpu.matmul %70, %43, %cst_25 {dimension_numbers = #tpu.dot_dimension_numbers<[1], [0], [0], [1], [0, 0, 1, 1], [], []>} : vector<8x8xf32>, vector<8x32xf32>, vector<8x32xf32> -> vector<8x32xf32>
    %72 = vector.extract_strided_slice %34 {offsets = [0, 32], sizes = [8, 32], strides = [1, 1]} : vector<8x64xf32> to vector<8x32xf32>
    %73 = vector.extract_strided_slice %35 {offsets = [0, 32], sizes = [8, 32], strides = [1, 1]} : vector<8x64xf32> to vector<8x32xf32>
    %74 = vector.extract_strided_slice %29 {offsets = [0, 64], sizes = [8, 32], strides = [1, 1]} : vector<8x128xf32> to vector<8x32xf32>
    "tpu.trace_start"() <{level = 10 : i32, message = "md,kd->mk"}> : () -> ()
    %cst_26 = arith.constant dense<0.000000e+00> : vector<8x8xf32>
    %75 = tpu.matmul %74, %72, %cst_26 {dimension_numbers = #tpu.dot_dimension_numbers<[1], [1], [0], [0], [0, 0, 1, 0], [], []>} : vector<8x32xf32>, vector<8x32xf32>, vector<8x8xf32> -> vector<8x8xf32>
    "tpu.trace_stop"() : () -> ()
    %76 = arith.addf %75, %41 : vector<8x8xf32>
    %cst_27 = arith.constant dense<0xFF800000> : vector<8xf32>
    %77 = vector.multi_reduction <maximumf>, %76, %cst_27 [1] : vector<8x8xf32> to vector<8xf32>
    %78 = vector.shape_cast %77 : vector<8xf32> to vector<8x1xf32>
    %79 = vector.broadcast %78 : vector<8x1xf32> to vector<8x8xf32>
    %80 = arith.subf %76, %79 : vector<8x8xf32>
    %81 = math.exp %80 : vector<8x8xf32>
    %cst_28 = arith.constant dense<0.000000e+00> : vector<8xf32>
    %82 = vector.multi_reduction <add>, %81, %cst_28 [1] : vector<8x8xf32> to vector<8xf32>
    %83 = vector.shape_cast %82 : vector<8xf32> to vector<8x1xf32>
    %84 = tpu.reciprocal %83 {approx = true} : vector<8x1xf32> -> vector<8x1xf32>
    %85 = vector.broadcast %84 : vector<8x1xf32> to vector<8x8xf32>
    %86 = arith.mulf %81, %85 : vector<8x8xf32>
    %cst_29 = arith.constant dense<0.000000e+00> : vector<8x32xf32>
    %87 = tpu.matmul %86, %73, %cst_29 {dimension_numbers = #tpu.dot_dimension_numbers<[1], [0], [0], [1], [0, 0, 1, 1], [], []>} : vector<8x8xf32>, vector<8x32xf32>, vector<8x32xf32> -> vector<8x32xf32>
    %88 = vector.extract_strided_slice %29 {offsets = [0, 96], sizes = [8, 32], strides = [1, 1]} : vector<8x128xf32> to vector<8x32xf32>
    "tpu.trace_start"() <{level = 10 : i32, message = "md,kd->mk"}> : () -> ()
    %cst_30 = arith.constant dense<0.000000e+00> : vector<8x8xf32>
    %89 = tpu.matmul %88, %72, %cst_30 {dimension_numbers = #tpu.dot_dimension_numbers<[1], [1], [0], [0], [0, 0, 1, 0], [], []>} : vector<8x32xf32>, vector<8x32xf32>, vector<8x8xf32> -> vector<8x8xf32>
    "tpu.trace_stop"() : () -> ()
    %90 = arith.addf %89, %41 : vector<8x8xf32>
    %cst_31 = arith.constant dense<0xFF800000> : vector<8xf32>
    %91 = vector.multi_reduction <maximumf>, %90, %cst_31 [1] : vector<8x8xf32> to vector<8xf32>
    %92 = vector.shape_cast %91 : vector<8xf32> to vector<8x1xf32>
    %93 = vector.broadcast %92 : vector<8x1xf32> to vector<8x8xf32>
    %94 = arith.subf %90, %93 : vector<8x8xf32>
    %95 = math.exp %94 : vector<8x8xf32>
    %cst_32 = arith.constant dense<0.000000e+00> : vector<8xf32>
    %96 = vector.multi_reduction <add>, %95, %cst_32 [1] : vector<8x8xf32> to vector<8xf32>
    %97 = vector.shape_cast %96 : vector<8xf32> to vector<8x1xf32>
    %98 = tpu.reciprocal %97 {approx = true} : vector<8x1xf32> -> vector<8x1xf32>
    %99 = vector.broadcast %98 : vector<8x1xf32> to vector<8x8xf32>
    %100 = arith.mulf %95, %99 : vector<8x8xf32>
    %cst_33 = arith.constant dense<0.000000e+00> : vector<8x32xf32>
    %101 = tpu.matmul %100, %73, %cst_33 {dimension_numbers = #tpu.dot_dimension_numbers<[1], [0], [0], [1], [0, 0, 1, 1], [], []>} : vector<8x8xf32>, vector<8x32xf32>, vector<8x32xf32> -> vector<8x32xf32>
    %102 = tpu.concatenate %57, %71, %87, %101 in 1 : vector<8x32xf32>, vector<8x32xf32>, vector<8x32xf32>, vector<8x32xf32> -> vector<8x128xf32>
    %c0_34 = arith.constant 0 : index
    %c0_35 = arith.constant 0 : index
    %103 = vector.load %arg8[%c0_34, %c0_35] : memref<128x128xf32, #tpu.memory_space<vmem>>, vector<128x128xf32>
    %cst_36 = arith.constant dense<0.000000e+00> : vector<8x128xf32>
    %104 = tpu.matmul %102, %103, %cst_36 {dimension_numbers = #tpu.dot_dimension_numbers<[1], [0], [0], [1], [0, 0, 1, 1], [], []>} : vector<8x128xf32>, vector<128x128xf32>, vector<8x128xf32> -> vector<8x128xf32>
    %105 = arith.addf %1, %104 : vector<8x128xf32>
    %106 = arith.mulf %105, %105 : vector<8x128xf32>
    %cst_37 = arith.constant dense<0.000000e+00> : vector<8xf32>
    %107 = vector.multi_reduction <add>, %106, %cst_37 [1] : vector<8x128xf32> to vector<8xf32>
    %108 = vector.shape_cast %107 : vector<8xf32> to vector<8x1xf32>
    %cst_38 = arith.constant 1.280000e+02 : f32
    %109 = vector.broadcast %cst_38 : f32 to vector<8x1xf32>
    %110 = arith.divf %108, %109 : vector<8x1xf32>
    %cst_39 = arith.constant 9.99999997E-7 : f32
    %111 = vector.broadcast %cst_39 : f32 to vector<8x1xf32>
    %112 = arith.addf %110, %111 : vector<8x1xf32>
    %113 = math.rsqrt %112 : vector<8x1xf32>
    %114 = vector.broadcast %113 : vector<8x1xf32> to vector<8x128xf32>
    %115 = arith.mulf %105, %114 : vector<8x128xf32>
    %c0_40 = arith.constant 0 : index
    %c0_41 = arith.constant 0 : index
    %116 = vector.load %arg9[%c0_40, %c0_41] : memref<1x128xf32, #tpu.memory_space<vmem>>, vector<1x128xf32>
    %117 = vector.broadcast %116 : vector<1x128xf32> to vector<8x128xf32>
    %118 = arith.mulf %115, %117 : vector<8x128xf32>
    %c0_42 = arith.constant 0 : index
    %c0_43 = arith.constant 0 : index
    %119 = vector.load %arg10[%c0_42, %c0_43] : memref<128x512xf32, #tpu.memory_space<vmem>>, vector<128x512xf32>
    %cst_44 = arith.constant dense<0.000000e+00> : vector<8x512xf32>
    %120 = tpu.matmul %118, %119, %cst_44 {dimension_numbers = #tpu.dot_dimension_numbers<[1], [0], [0], [1], [0, 0, 1, 1], [], []>} : vector<8x128xf32>, vector<128x512xf32>, vector<8x512xf32> -> vector<8x512xf32>
    %121 = vector.extract_strided_slice %120 {offsets = [0, 0], sizes = [8, 256], strides = [1, 1]} : vector<8x512xf32> to vector<8x256xf32>
    %122 = vector.extract_strided_slice %120 {offsets = [0, 256], sizes = [8, 256], strides = [1, 1]} : vector<8x512xf32> to vector<8x256xf32>
    %123 = arith.negf %121 : vector<8x256xf32>
    %124 = math.exp %123 : vector<8x256xf32>
    %cst_45 = arith.constant 1.000000e+00 : f32
    %125 = vector.broadcast %cst_45 : f32 to vector<8x256xf32>
    %126 = arith.addf %125, %124 : vector<8x256xf32>
    %127 = arith.divf %125, %126 : vector<8x256xf32>
    %128 = arith.mulf %121, %127 : vector<8x256xf32>
    %129 = arith.mulf %128, %122 : vector<8x256xf32>
    %c0_46 = arith.constant 0 : index
    %c0_47 = arith.constant 0 : index
    %130 = vector.load %arg11[%c0_46, %c0_47] : memref<256x128xf32, #tpu.memory_space<vmem>>, vector<256x128xf32>
    %cst_48 = arith.constant dense<0.000000e+00> : vector<8x128xf32>
    %131 = tpu.matmul %129, %130, %cst_48 {dimension_numbers = #tpu.dot_dimension_numbers<[1], [0], [0], [1], [0, 0, 1, 1], [], []>} : vector<8x256xf32>, vector<256x128xf32>, vector<8x128xf32> -> vector<8x128xf32>
    %c0_49 = arith.constant 0 : index
    %c0_50 = arith.constant 0 : index
    %c0_51 = arith.constant 0 : index
    %132 = vector.load %arg4[%c0_49, %c0_50, %c0_51] : memref<1x8x1xf32, #tpu.memory_space<vmem>>, vector<1x8x1xf32>
    %133 = vector.shape_cast %132 : vector<1x8x1xf32> to vector<8x1xf32>
    %134 = vector.broadcast %133 : vector<8x1xf32> to vector<8x128xf32>
    %135 = arith.mulf %134, %131 : vector<8x128xf32>
    %136 = arith.addf %105, %135 : vector<8x128xf32>
    %137 = vector.shape_cast %136 : vector<8x128xf32> to vector<1x8x128xf32>
    %c0_52 = arith.constant 0 : index
    %c0_53 = arith.constant 0 : index
    %c0_54 = arith.constant 0 : index
    %138 = vector.load %arg12[%c0_52, %c0_53, %c0_54] : memref<1x8x128xf32, #tpu.memory_space<vmem>>, vector<1x8x128xf32>
    tpu.vector_store %arg12[%c0_52, %c0_53, %c0_54], %137 {strides = array<i32>} : memref<1x8x128xf32, #tpu.memory_space<vmem>>, vector<1x8x128xf32>,
    %139 = arith.addf %105, %131 : vector<8x128xf32>
    %140 = arith.mulf %105, %139 : vector<8x128xf32>
    %cst_55 = arith.constant dense<0.000000e+00> : vector<8xf32>
    %141 = vector.multi_reduction <add>, %140, %cst_55 [1] : vector<8x128xf32> to vector<8xf32>
    %142 = vector.shape_cast %141 : vector<8xf32> to vector<8x1xf32>
    %143 = arith.mulf %105, %105 : vector<8x128xf32>
    %cst_56 = arith.constant dense<0.000000e+00> : vector<8xf32>
    %144 = vector.multi_reduction <add>, %143, %cst_56 [1] : vector<8x128xf32> to vector<8xf32>
    %145 = vector.shape_cast %144 : vector<8xf32> to vector<8x1xf32>
    %146 = math.sqrt %145 : vector<8x1xf32>
    %147 = arith.mulf %139, %139 : vector<8x128xf32>
    %cst_57 = arith.constant dense<0.000000e+00> : vector<8xf32>
    %148 = vector.multi_reduction <add>, %147, %cst_57 [1] : vector<8x128xf32> to vector<8xf32>
    %149 = vector.shape_cast %148 : vector<8xf32> to vector<8x1xf32>
    %150 = math.sqrt %149 : vector<8x1xf32>
    %cst_58 = arith.constant 9.99999993E-9 : f32
    %151 = vector.broadcast %cst_58 : f32 to vector<8x1xf32>
    %152 = arith.maximumf %146, %151 : vector<8x1xf32>
    %cst_59 = arith.constant 9.99999993E-9 : f32
    %153 = vector.broadcast %cst_59 : f32 to vector<8x1xf32>
    %154 = arith.maximumf %150, %153 : vector<8x1xf32>
    %155 = arith.mulf %152, %154 : vector<8x1xf32>
    %156 = arith.divf %142, %155 : vector<8x1xf32>
    %157 = vector.shape_cast %156 : vector<8x1xf32> to vector<1x8x1xf32>
    %c0_60 = arith.constant 0 : index
    %c0_61 = arith.constant 0 : index
    %c0_62 = arith.constant 0 : index
    %158 = vector.load %arg13[%c0_60, %c0_61, %c0_62] : memref<1x8x1xf32, #tpu.memory_space<vmem>>, vector<1x8x1xf32>
    tpu.vector_store %arg13[%c0_60, %c0_61, %c0_62], %157 {strides = array<i32>} : memref<1x8x1xf32, #tpu.memory_space<vmem>>, vector<1x8x1xf32>,
    return
  }
  func.func @transform_0(%arg0: i32) -> (i32, i32, i32) {
    %c0_i32 = arith.constant 0 : i32
    %c0_i32_0 = arith.constant 0 : i32
    %c0_i32_1 = arith.constant 0 : i32
    return %arg0, %c0_i32, %c0_i32_0 : i32, i32, i32
  }
  func.func @transform_1(%arg0: i32) -> (i32, i32) {
    %c0_i32 = arith.constant 0 : i32
    %c0_i32_0 = arith.constant 0 : i32
    %c0_i32_1 = arith.constant 0 : i32
    return %c0_i32, %c0_i32_0 : i32, i32
  }
  func.func @transform_2(%arg0: i32) -> (i32, i32) {
    %c0_i32 = arith.constant 0 : i32
    %c0_i32_0 = arith.constant 0 : i32
    %c0_i32_1 = arith.constant 0 : i32
    return %c0_i32, %c0_i32_0 : i32, i32
  }
  func.func @transform_3(%arg0: i32) -> (i32, i32, i32) {
    %c0_i32 = arith.constant 0 : i32
    %c0_i32_0 = arith.constant 0 : i32
    %c0_i32_1 = arith.constant 0 : i32
    return %arg0, %c0_i32, %c0_i32_0 : i32, i32, i32
  }
  func.func @transform_4(%arg0: i32) -> (i32, i32) {
    %c0_i32 = arith.constant 0 : i32
    %c0_i32_0 = arith.constant 0 : i32
    %c0_i32_1 = arith.constant 0 : i32
    return %c0_i32, %c0_i32_0 : i32, i32
  }
  func.func @transform_5(%arg0: i32) -> (i32, i32) {
    %c0_i32 = arith.constant 0 : i32
    %c0_i32_0 = arith.constant 0 : i32
    %c0_i32_1 = arith.constant 0 : i32
    return %c0_i32, %c0_i32_0 : i32, i32
  }
  func.func @transform_6(%arg0: i32) -> (i32, i32) {
    %c0_i32 = arith.constant 0 : i32
    %c0_i32_0 = arith.constant 0 : i32
    %c0_i32_1 = arith.constant 0 : i32
    return %c0_i32, %c0_i32_0 : i32, i32
  }
  func.func @transform_7(%arg0: i32) -> (i32, i32) {
    %c0_i32 = arith.constant 0 : i32
    %c0_i32_0 = arith.constant 0 : i32
    %c0_i32_1 = arith.constant 0 : i32
    return %c0_i32, %c0_i32_0 : i32, i32
  }
  func.func @transform_8(%arg0: i32) -> (i32, i32) {
    %c0_i32 = arith.constant 0 : i32
    %c0_i32_0 = arith.constant 0 : i32
    %c0_i32_1 = arith.constant 0 : i32
    return %c0_i32, %c0_i32_0 : i32, i32
  }
  func.func @transform_9(%arg0: i32) -> (i32, i32) {
    %c0_i32 = arith.constant 0 : i32
    %c0_i32_0 = arith.constant 0 : i32
    %c0_i32_1 = arith.constant 0 : i32
    return %c0_i32, %c0_i32_0 : i32, i32
  }
  func.func @transform_10(%arg0: i32) -> (i32, i32) {
    %c0_i32 = arith.constant 0 : i32
    %c0_i32_0 = arith.constant 0 : i32
    %c0_i32_1 = arith.constant 0 : i32
    return %c0_i32, %c0_i32_0 : i32, i32
  }
  func.func @transform_11(%arg0: i32) -> (i32, i32, i32) {
    %c0_i32 = arith.constant 0 : i32
    %c0_i32_0 = arith.constant 0 : i32
    %c0_i32_1 = arith.constant 0 : i32
    return %arg0, %c0_i32, %c0_i32_0 : i32, i32, i32
  }
  func.func @transform_12(%arg0: i32) -> (i32, i32, i32) {
    %c0_i32 = arith.constant 0 : i32
    %c0_i32_0 = arith.constant 0 : i32
    %c0_i32_1 = arith.constant 0 : i32
    return %arg0, %c0_i32, %c0_i32_0 : i32, i32, i32
  }
}

</mosaic_0001>

<llo_original>
// kernel: _lambda_.1
$region0: #{_lambda_.1}
  #allocation0 [shape = 'u32[]', space=smem, size = 0x4, offset = 0x4, fixed_abs, tag = 'smem constant byte address 0x4 - core index']
  #allocation1 [shape = 'u32[144,128]{1,0:T(1,128)}', space=vmem, size = 0x12000, scoped, tag = 'internal scratch']
  %s0 = inlined_call_operand.vmem [shape: f32[2,8,128], index: 0, kind: input, shape index: {}]
  %s1 = inlined_call_operand.vmem [shape: f32[8,32], index: 1, kind: input, shape index: {}]
  %s2 = inlined_call_operand.vmem [shape: f32[8,32], index: 2, kind: input, shape index: {}]
  %s3 = inlined_call_operand.vmem [shape: f32[2,8,1], index: 3, kind: input, shape index: {}]
  %s4 = inlined_call_operand.vmem [shape: f32[1,128], index: 4, kind: input, shape index: {}]
  %s5 = inlined_call_operand.vmem [shape: f32[128,256], index: 5, kind: input, shape index: {}]
  %s6 = inlined_call_operand.vmem [shape: f32[128,192], index: 6, kind: input, shape index: {}]
  %s7 = inlined_call_operand.vmem [shape: f32[128,128], index: 7, kind: input, shape index: {}]
  %s8 = inlined_call_operand.vmem [shape: f32[1,128], index: 8, kind: input, shape index: {}]
  %s9 = inlined_call_operand.vmem [shape: f32[128,512], index: 9, kind: input, shape index: {}]
  %s10 = inlined_call_operand.vmem [shape: f32[256,128], index: 10, kind: input, shape index: {}]
  %s11 = inlined_call_operand.hbm [shape: f32[2,8,128], index: 11, kind: output, shape index: {0}]
  %s12 = inlined_call_operand.vmem [shape: f32[2,8,1], index: 12, kind: output, shape index: {1}]
  %13 = xla_tuple %s11, %s12
  %s14 = sld [smem:[#allocation0]]
  $region85: #{_lambda_.1} parent=0
    _
  %s16 = ssub.s32 1, %s14
  %s17 = scalar_select 0, %s16, %s14
  $region1: #{_lambda_.1} parent=0
    #allocation2 [shape = 'u8[8192]{0}', space=vmem, size = 0x2000, scoped, tag = 'output window, operand 0']
    #allocation3 [shape = 's32[2]{0}', space=sflag, size = 0x8, scoped, tag = 'scoped memory for _lambda_.1']
    %18 = vsyncpa [#allocation3], 0
    %s19 = scalar_lea.sflag [#allocation3], 1
    %20 = vsyncpa %s19, 0
    loop: start=0, step=1, limit=4
    $region2: #{_lambda_.1} parent=1 // loop_pre_header
      _
    $region3: #{_lambda_.1} parent=1 // loop_header
      %s22 = sphi 0, %s26
      %p23 = scmp.ge.s32.totalorder %s22, 4
      %s32 = sphi 0, %s34
      %s35 = sphi 0, %s32
      %s36 = sphi 0, %s35
      %s52 = sphi 0, %s36
      %s56 = sphi 0, %s56
      %s58 = sphi 0, %s56
      %s59 = sphi 0, %s58
      %s73 = sphi 0, %s59
      %s77 = sphi 0, %s77
      %s79 = sphi 0, %s77
      %s80 = sphi 0, %s79
      %s94 = sphi 0, %s80
      %s100 = sphi 0, %s102
      %s103 = sphi 0, %s100
      %s104 = sphi 0, %s103
      %s120 = sphi 0, %s104
      %s124 = sphi 0, %s124
      %s126 = sphi 0, %s124
      %s127 = sphi 0, %s126
      %s141 = sphi 0, %s127
      %s145 = sphi 0, %s145
      %s147 = sphi 0, %s145
      %s148 = sphi 0, %s147
      %s162 = sphi 0, %s148
      %s166 = sphi 0, %s166
      %s168 = sphi 0, %s166
      %s169 = sphi 0, %s168
      %s183 = sphi 0, %s169
      %s187 = sphi 0, %s187
      %s189 = sphi 0, %s187
      %s190 = sphi 0, %s189
      %s204 = sphi 0, %s190
      %s208 = sphi 0, %s208
      %s210 = sphi 0, %s208
      %s211 = sphi 0, %s210
      %s225 = sphi 0, %s211
      %s229 = sphi 0, %s229
      %s231 = sphi 0, %s229
      %s232 = sphi 0, %s231
      %s246 = sphi 0, %s232
      %s250 = sphi 0, %s250
      %s252 = sphi 0, %s250
      %s253 = sphi 0, %s252
      %s267 = sphi 0, %s253
      %s273 = sphi 0, %s275
      %s276 = sphi 0, %s273
      %s277 = sphi 0, %s276
      %s293 = sphi 0, %s277
      %s299 = sphi 0, %s301
      %s302 = sphi 0, %s299
      %s303 = sphi 0, %s302
      %s319 = sphi 0, %s303
    $region4: #{_lambda_.1} parent=1 // loop_header_branch
      %25 = sbr.rel (%p23) target = $region8
    $region5: #{_lambda_.1} parent=1 // loop_body
      %s27 = ssub.s32 %s22, 1
      %s28 = ssub.s32 %s22, 2
      %s29 = sadd.s32 %s22, 1
      %s30 = ssub.s32 %s22, %s29
      %p31 = scmp.eq.s32.totalorder %s30, 0
      %s33 = sadd.s32 %s32, 1
      %s34 = scalar_select %p31, %s32, %s33
      %p37 = pneg %p31
      %p38 = scmp.eq.s32.totalorder %s22, 1
      %p39 = por %p37, %p38
      %p40 = scmp.ne.s32.totalorder %s32, %s35
      %p41 = scmp.eq.s32.totalorder %s22, 0
      %p42 = por %p40, %p41
      %p43 = scmp.ne.s32.totalorder %s32, %s35
      %p44 = scmp.eq.s32.totalorder %s27, 1
      %p45 = por %p43, %p44
      %p46 = scmp.ne.s32.totalorder %s35, %s36
      %p47 = scmp.eq.s32.totalorder %s27, 0
      %p48 = por %p46, %p47
      %p49 = scmp.ne.s32.totalorder %s35, %s36
      %p50 = scmp.eq.s32.totalorder %s28, 1
      %p51 = por %p49, %p50
      %p53 = scmp.ne.s32.totalorder %s36, %s52
      %p54 = scmp.eq.s32.totalorder %s28, 0
      %p55 = por %p53, %p54
      %s57 = sadd.s32 %s56, 1
      %p60 = scmp.eq.s32.totalorder %s22, 1
      %p61 = scmp.ne.s32.totalorder %s56, %s58
      %p62 = scmp.eq.s32.totalorder %s22, 0
      %p63 = por %p61, %p62
      %p64 = scmp.ne.s32.totalorder %s56, %s58
      %p65 = scmp.eq.s32.totalorder %s27, 1
      %p66 = por %p64, %p65
      %p67 = scmp.ne.s32.totalorder %s58, %s59
      %p68 = scmp.eq.s32.totalorder %s27, 0
      %p69 = por %p67, %p68
      %p70 = scmp.ne.s32.totalorder %s58, %s59
      %p71 = scmp.eq.s32.totalorder %s28, 1
      %p72 = por %p70, %p71
      %p74 = scmp.ne.s32.totalorder %s59, %s73
      %p75 = scmp.eq.s32.totalorder %s28, 0
      %p76 = por %p74, %p75
      %s78 = sadd.s32 %s77, 1
      %p81 = scmp.eq.s32.totalorder %s22, 1
      %p82 = scmp.ne.s32.totalorder %s77, %s79
      %p83 = scmp.eq.s32.totalorder %s22, 0
      %p84 = por %p82, %p83
      %p85 = scmp.ne.s32.totalorder %s77, %s79
      %p86 = scmp.eq.s32.totalorder %s27, 1
      %p87 = por %p85, %p86
      %p88 = scmp.ne.s32.totalorder %s79, %s80
      %p89 = scmp.eq.s32.totalorder %s27, 0
      %p90 = por %p88, %p89
      %p91 = scmp.ne.s32.totalorder %s79, %s80
      %p92 = scmp.eq.s32.totalorder %s28, 1
      %p93 = por %p91, %p92
      %p95 = scmp.ne.s32.totalorder %s80, %s94
      %p96 = scmp.eq.s32.totalorder %s28, 0
      %p97 = por %p95, %p96
      %s98 = ssub.s32 %s22, %s29
      %p99 = scmp.eq.s32.totalorder %s98, 0
      %s101 = sadd.s32 %s100, 1
      %s102 = scalar_select %p99, %s100, %s101
      %p105 = pneg %p99
      %p106 = scmp.eq.s32.totalorder %s22, 1
      %p107 = por %p105, %p106
      %p108 = scmp.ne.s32.totalorder %s100, %s103
      %p109 = scmp.eq.s32.totalorder %s22, 0
      %p110 = por %p108, %p109
      %p111 = scmp.ne.s32.totalorder %s100, %s103
      %p112 = scmp.eq.s32.totalorder %s27, 1
      %p113 = por %p111, %p112
      %p114 = scmp.ne.s32.totalorder %s103, %s104
      %p115 = scmp.eq.s32.totalorder %s27, 0
      %p116 = por %p114, %p115
      %p117 = scmp.ne.s32.totalorder %s103, %s104
      %p118 = scmp.eq.s32.totalorder %s28, 1
      %p119 = por %p117, %p118
      %p121 = scmp.ne.s32.totalorder %s104, %s120
      %p122 = scmp.eq.s32.totalorder %s28, 0
      %p123 = por %p121, %p122
      %s125 = sadd.s32 %s124, 1
      %p128 = scmp.eq.s32.totalorder %s22, 1
      %p129 = scmp.ne.s32.totalorder %s124, %s126
      %p130 = scmp.eq.s32.totalorder %s22, 0
      %p131 = por %p129, %p130
      %p132 = scmp.ne.s32.totalorder %s124, %s126
      %p133 = scmp.eq.s32.totalorder %s27, 1
      %p134 = por %p132, %p133
      %p135 = scmp.ne.s32.totalorder %s126, %s127
      %p136 = scmp.eq.s32.totalorder %s27, 0
      %p137 = por %p135, %p136
      %p138 = scmp.ne.s32.totalorder %s126, %s127
      %p139 = scmp.eq.s32.totalorder %s28, 1
      %p140 = por %p138, %p139
      %p142 = scmp.ne.s32.totalorder %s127, %s141
      %p143 = scmp.eq.s32.totalorder %s28, 0
      %p144 = por %p142, %p143
      %s146 = sadd.s32 %s145, 1
      %p149 = scmp.eq.s32.totalorder %s22, 1
      %p150 = scmp.ne.s32.totalorder %s145, %s147
      %p151 = scmp.eq.s32.totalorder %s22, 0
      %p152 = por %p150, %p151
      %p153 = scmp.ne.s32.totalorder %s145, %s147
      %p154 = scmp.eq.s32.totalorder %s27, 1
      %p155 = por %p153, %p154
      %p156 = scmp.ne.s32.totalorder %s147, %s148
      %p157 = scmp.eq.s32.totalorder %s27, 0
      %p158 = por %p156, %p157
      %p159 = scmp.ne.s32.totalorder %s147, %s148
      %p160 = scmp.eq.s32.totalorder %s28, 1
      %p161 = por %p159, %p160
      %p163 = scmp.ne.s32.totalorder %s148, %s162
      %p164 = scmp.eq.s32.totalorder %s28, 0
      %p165 = por %p163, %p164
      %s167 = sadd.s32 %s166, 1
      %p170 = scmp.eq.s32.totalorder %s22, 1
      %p171 = scmp.ne.s32.totalorder %s166, %s168
      %p172 = scmp.eq.s32.totalorder %s22, 0
      %p173 = por %p171, %p172
      %p174 = scmp.ne.s32.totalorder %s166, %s168
      %p175 = scmp.eq.s32.totalorder %s27, 1
      %p176 = por %p174, %p175
      %p177 = scmp.ne.s32.totalorder %s168, %s169
      %p178 = scmp.eq.s32.totalorder %s27, 0
      %p179 = por %p177, %p178
      %p180 = scmp.ne.s32.totalorder %s168, %s169
      %p181 = scmp.eq.s32.totalorder %s28, 1
      %p182 = por %p180, %p181
      %p184 = scmp.ne.s32.totalorder %s169, %s183
      %p185 = scmp.eq.s32.totalorder %s28, 0
      %p186 = por %p184, %p185
      %s188 = sadd.s32 %s187, 1
      %p191 = scmp.eq.s32.totalorder %s22, 1
      %p192 = scmp.ne.s32.totalorder %s187, %s189
      %p193 = scmp.eq.s32.totalorder %s22, 0
      %p194 = por %p192, %p193
      %p195 = scmp.ne.s32.totalorder %s187, %s189
      %p196 = scmp.eq.s32.totalorder %s27, 1
      %p197 = por %p195, %p196
      %p198 = scmp.ne.s32.totalorder %s189, %s190
      %p199 = scmp.eq.s32.totalorder %s27, 0
      %p200 = por %p198, %p199
      %p201 = scmp.ne.s32.totalorder %s189, %s190
      %p202 = scmp.eq.s32.totalorder %s28, 1
      %p203 = por %p201, %p202
      %p205 = scmp.ne.s32.totalorder %s190, %s204
      %p206 = scmp.eq.s32.totalorder %s28, 0
      %p207 = por %p205, %p206
      %s209 = sadd.s32 %s208, 1
      %p212 = scmp.eq.s32.totalorder %s22, 1
      %p213 = scmp.ne.s32.totalorder %s208, %s210
      %p214 = scmp.eq.s32.totalorder %s22, 0
      %p215 = por %p213, %p214
      %p216 = scmp.ne.s32.totalorder %s208, %s210
      %p217 = scmp.eq.s32.totalorder %s27, 1
      %p218 = por %p216, %p217
      %p219 = scmp.ne.s32.totalorder %s210, %s211
      %p220 = scmp.eq.s32.totalorder %s27, 0
      %p221 = por %p219, %p220
      %p222 = scmp.ne.s32.totalorder %s210, %s211
      %p223 = scmp.eq.s32.totalorder %s28, 1
      %p224 = por %p222, %p223
      %p226 = scmp.ne.s32.totalorder %s211, %s225
      %p227 = scmp.eq.s32.totalorder %s28, 0
      %p228 = por %p226, %p227
      %s230 = sadd.s32 %s229, 1
      %p233 = scmp.eq.s32.totalorder %s22, 1
      %p234 = scmp.ne.s32.totalorder %s229, %s231
      %p235 = scmp.eq.s32.totalorder %s22, 0
      %p236 = por %p234, %p235
      %p237 = scmp.ne.s32.totalorder %s229, %s231
      %p238 = scmp.eq.s32.totalorder %s27, 1
      %p239 = por %p237, %p238
      %p240 = scmp.ne.s32.totalorder %s231, %s232
      %p241 = scmp.eq.s32.totalorder %s27, 0
      %p242 = por %p240, %p241
      %p243 = scmp.ne.s32.totalorder %s231, %s232
      %p244 = scmp.eq.s32.totalorder %s28, 1
      %p245 = por %p243, %p244
      %p247 = scmp.ne.s32.totalorder %s232, %s246
      %p248 = scmp.eq.s32.totalorder %s28, 0
      %p249 = por %p247, %p248
      %s251 = sadd.s32 %s250, 1
      %p254 = scmp.eq.s32.totalorder %s22, 1
      %p255 = scmp.ne.s32.totalorder %s250, %s252
      %p256 = scmp.eq.s32.totalorder %s22, 0
      %p257 = por %p255, %p256
      %p258 = scmp.ne.s32.totalorder %s250, %s252
      %p259 = scmp.eq.s32.totalorder %s27, 1
      %p260 = por %p258, %p259
      %p261 = scmp.ne.s32.totalorder %s252, %s253
      %p262 = scmp.eq.s32.totalorder %s27, 0
      %p263 = por %p261, %p262
      %p264 = scmp.ne.s32.totalorder %s252, %s253
      %p265 = scmp.eq.s32.totalorder %s28, 1
      %p266 = por %p264, %p265
      %p268 = scmp.ne.s32.totalorder %s253, %s267
      %p269 = scmp.eq.s32.totalorder %s28, 0
      %p270 = por %p268, %p269
      %s271 = ssub.s32 %s22, %s29
      %p272 = scmp.eq.s32.totalorder %s271, 0
      %s274 = sadd.s32 %s273, 1
      %s275 = scalar_select %p272, %s273, %s274
      %p278 = pneg %p272
      %p279 = scmp.eq.s32.totalorder %s22, 1
      %p280 = por %p278, %p279
      %p281 = scmp.ne.s32.totalorder %s273, %s276
      %p282 = scmp.eq.s32.totalorder %s22, 0
      %p283 = por %p281, %p282
      %p284 = scmp.ne.s32.totalorder %s273, %s276
      %p285 = scmp.eq.s32.totalorder %s27, 1
      %p286 = por %p284, %p285
      %p287 = scmp.ne.s32.totalorder %s276, %s277
      %p288 = scmp.eq.s32.totalorder %s27, 0
      %p289 = por %p287, %p288
      %p290 = scmp.ne.s32.totalorder %s276, %s277
      %p291 = scmp.eq.s32.totalorder %s28, 1
      %p292 = por %p290, %p291
      %p294 = scmp.ne.s32.totalorder %s277, %s293
      %p295 = scmp.eq.s32.totalorder %s28, 0
      %p296 = por %p294, %p295
      %s297 = ssub.s32 %s22, %s29
      %p298 = scmp.eq.s32.totalorder %s297, 0
      %s300 = sadd.s32 %s299, 1
      %s301 = scalar_select %p298, %s299, %s300
      %p304 = pneg %p298
      %p305 = scmp.eq.s32.totalorder %s22, 1
      %p306 = por %p304, %p305
      %p307 = scmp.ne.s32.totalorder %s299, %s302
      %p308 = scmp.eq.s32.totalorder %s22, 0
      %p309 = por %p307, %p308
      %p310 = scmp.ne.s32.totalorder %s299, %s302
      %p311 = scmp.eq.s32.totalorder %s27, 1
      %p312 = por %p310, %p311
      %p313 = scmp.ne.s32.totalorder %s302, %s303
      %p314 = scmp.eq.s32.totalorder %s27, 0
      %p315 = por %p313, %p314
      %p316 = scmp.ne.s32.totalorder %s302, %s303
      %p317 = scmp.eq.s32.totalorder %s28, 1
      %p318 = por %p316, %p317
      %p320 = scmp.ne.s32.totalorder %s303, %s319
      %p321 = scmp.eq.s32.totalorder %s28, 0
      %p322 = por %p320, %p321
      %p323 = scmp.le.s32.totalorder 1, %s22
      %p324 = scmp.lt.s32.totalorder %s22, 3
      %p325 = pnand %p323, %p324
      %p326 = pneg %p325
      // Predicated region
      $region9: #{_lambda_.1} parent=5 // pred_check
        _
      $region10: #{_lambda_.1} parent=5 // pred_check_branch
        %328 = sbr.rel (%p325) target = $region12
      $region11: #{_lambda_.1} parent=5 // pred_region
        %s329 = ssub.s32 %s22, 1
        // Predicated region
        $region13: #{_lambda_.1} parent=11 // pred_check
          %p330 = pneg %p69
        $region14: #{_lambda_.1} parent=11 // pred_check_branch
          %332 = sbr.rel (%p330) target = $region16
        $region15: #{_lambda_.1} parent=11 // pred_region
          _
        $region16: #{_lambda_.1} parent=11 // pred_fallthru
          _
        // Predicated region
        $region17: #{_lambda_.1} parent=11 // pred_check
          %p333 = pneg %p90
        $region18: #{_lambda_.1} parent=11 // pred_check_branch
          %335 = sbr.rel (%p333) target = $region20
        $region19: #{_lambda_.1} parent=11 // pred_region
          _
        $region20: #{_lambda_.1} parent=11 // pred_fallthru
          _
        // Predicated region
        $region21: #{_lambda_.1} parent=11 // pred_check
          %p336 = pneg %p137
        $region22: #{_lambda_.1} parent=11 // pred_check_branch
          %338 = sbr.rel (%p336) target = $region24
        $region23: #{_lambda_.1} parent=11 // pred_region
          _
        $region24: #{_lambda_.1} parent=11 // pred_fallthru
          _
        // Predicated region
        $region25: #{_lambda_.1} parent=11 // pred_check
          %p339 = pneg %p158
        $region26: #{_lambda_.1} parent=11 // pred_check_branch
          %341 = sbr.rel (%p339) target = $region28
        $region27: #{_lambda_.1} parent=11 // pred_region
          _
        $region28: #{_lambda_.1} parent=11 // pred_fallthru
          _
        // Predicated region
        $region29: #{_lambda_.1} parent=11 // pred_check
          %p342 = pneg %p179
        $region30: #{_lambda_.1} parent=11 // pred_check_branch
          %344 = sbr.rel (%p342) target = $region32
        $region31: #{_lambda_.1} parent=11 // pred_region
          _
        $region32: #{_lambda_.1} parent=11 // pred_fallthru
          _
        // Predicated region
        $region33: #{_lambda_.1} parent=11 // pred_check
          %p345 = pneg %p200
        $region34: #{_lambda_.1} parent=11 // pred_check_branch
          %347 = sbr.rel (%p345) target = $region36
        $region35: #{_lambda_.1} parent=11 // pred_region
          _
        $region36: #{_lambda_.1} parent=11 // pred_fallthru
          _
        // Predicated region
        $region37: #{_lambda_.1} parent=11 // pred_check
          %p348 = pneg %p221
        $region38: #{_lambda_.1} parent=11 // pred_check_branch
          %350 = sbr.rel (%p348) target = $region40
        $region39: #{_lambda_.1} parent=11 // pred_region
          _
        $region40: #{_lambda_.1} parent=11 // pred_fallthru
          _
        // Predicated region
        $region41: #{_lambda_.1} parent=11 // pred_check
          %p351 = pneg %p242
        $region42: #{_lambda_.1} parent=11 // pred_check_branch
          %353 = sbr.rel (%p351) target = $region44
        $region43: #{_lambda_.1} parent=11 // pred_region
          _
        $region44: #{_lambda_.1} parent=11 // pred_fallthru
          _
        // Predicated region
        $region45: #{_lambda_.1} parent=11 // pred_check
          %p354 = pneg %p263
        $region46: #{_lambda_.1} parent=11 // pred_check_branch
          %356 = sbr.rel (%p354) target = $region48
        $region47: #{_lambda_.1} parent=11 // pred_region
          _
        $region48: #{_lambda_.1} parent=11 // pred_fallthru
          _
      $region12: #{_lambda_.1} parent=5 // pred_fallthru
        _
      %p357 = scmp.lt.s32.totalorder %s22, 2
      // Predicated region
      $region49: #{_lambda_.1} parent=5 // pred_check
        %p358 = pneg %p357
      $region50: #{_lambda_.1} parent=5 // pred_check_branch
        %360 = sbr.rel (%p358) target = $region52
      $region51: #{_lambda_.1} parent=5 // pred_region
        // Predicated region
        $region53: #{_lambda_.1} parent=51 // pred_check
          %p361 = pneg %p42
        $region54: #{_lambda_.1} parent=51 // pred_check_branch
          %363 = sbr.rel (%p361) target = $region56
        $region55: #{_lambda_.1} parent=51 // pred_region
          %p364 = scmp.lt.s32.totalorder %s22, 1
          %s365 = scalar_select %p364, %s22, 1
          %s366 = smul.addr %s365, 8
          %s367 = scalar_lea.vmem %s0, %s366
        $region56: #{_lambda_.1} parent=51 // pred_fallthru
          _
        // Predicated region
        $region57: #{_lambda_.1} parent=51 // pred_check
          %p368 = pneg %p110
        $region58: #{_lambda_.1} parent=51 // pred_check_branch
          %370 = sbr.rel (%p368) target = $region60
        $region59: #{_lambda_.1} parent=51 // pred_region
          %p371 = scmp.lt.s32.totalorder %s22, 1
          %s372 = scalar_select %p371, %s22, 1
          %s373 = smul.addr %s372, 8
          %s374 = scalar_lea.vmem %s3, %s373
        $region60: #{_lambda_.1} parent=51 // pred_fallthru
          _
      $region52: #{_lambda_.1} parent=5 // pred_fallthru
        _
      %p375 = scmp.le.s32.totalorder 1, %s22
      %p376 = scmp.lt.s32.totalorder %s22, 3
      %p377 = pnand %p375, %p376
      %p378 = pneg %p377
      // Predicated region
      $region61: #{_lambda_.1} parent=5 // pred_check
        _
      $region62: #{_lambda_.1} parent=5 // pred_check_branch
        %380 = sbr.rel (%p377) target = $region64
      $region63: #{_lambda_.1} parent=5 // pred_region
        %s381 = ssub.s32 %s22, 1
        %p382 = scmp.lt.s32.totalorder %s27, 1
        %s383 = scalar_select %p382, %s27, 1
        %s384 = smul.addr %s383, 8
        %s385 = scalar_lea.vmem %s0, %s384
        %p386 = pneg %p48
        %p387 = pneg %p45
        %p388 = pneg %p69
        %p389 = pneg %p66
        %p390 = pneg %p90
        %p391 = pneg %p87
        %p392 = scmp.lt.s32.totalorder %s27, 1
        %s393 = scalar_select %p392, %s27, 1
        %s394 = smul.addr %s393, 8
        %s395 = scalar_lea.vmem %s3, %s394
        %p396 = pneg %p116
        %p397 = pneg %p113
        %p398 = pneg %p137
        %p399 = pneg %p134
        %p400 = pneg %p158
        %p401 = pneg %p155
        %p402 = pneg %p179
        %p403 = pneg %p176
        %p404 = pneg %p200
        %p405 = pneg %p197
        %p406 = pneg %p221
        %p407 = pneg %p218
        %p408 = pneg %p242
        %p409 = pneg %p239
        %p410 = pneg %p263
        %p411 = pneg %p260
        %p412 = pneg %p289
        %p413 = pneg %p286
        %s414 = sand.u32 %s276, 1
        %s415 = scalar_lea.sflag [#allocation3], %s414
        %s416 = sand.u32 %s276, 1
        %s417 = smul.addr %s416, 8
        %s418 = scalar_lea.vmem [#allocation2], %s417
        %p419 = pneg %p315
        %p420 = pneg %p312
        %p421 = scmp.lt.s32.totalorder %s27, 1
        %s422 = scalar_select %p421, %s27, 1
        %s423 = smul.addr %s422, 8
        %s424 = scalar_lea.vmem %s12, %s423
        %p425 = scmp.lt.s32.totalorder %s27, 1
        %s426 = scalar_select %p425, %s27, 1
        %s427 = smul.addr %s426, 8
        %s428 = scalar_lea.vmem %s0, %s427
        %p429 = scmp.lt.s32.totalorder %s27, 1
        %s430 = scalar_select %p429, %s27, 1
        %s431 = smul.addr %s430, 8
        %s432 = scalar_lea.vmem %s3, %s431
        %p433 = scmp.lt.s32.totalorder %s27, 1
        %s434 = scalar_select %p433, %s27, 1
        %s435 = smul.addr %s434, 8
        %s436 = scalar_lea.vmem %s12, %s435
        %v437 = vld [vmem:[%s428] sm:$0xff]
        %v438 = vmul.f32 %v437, %v437
        %439 = vadd.xlane.f32.xlu0 %v438
        %v440 = vpop.xlane.xlu0 %439
        %v441 = vrcp.pop 128.0
        %v442 = vmul.f32 %v440, %v441
        %v443 = vadd.f32 %v442, 1e-06
        %v444 = vrsqrt.pop %v443
        %v445 = vmul.f32 %v437, %v444
        %v446 = vld [vmem:[%s4] sm:$0x1]
        %v448 = vlaneseq
        %v449 = vshrl.u32 %v448, 7
        %v450 = vsub.s32 0, %v449
        %v451 = vrot.slane %v446, %v450
        %v453 = vmul.f32 %v445, %v451
        %v454 = vld [vmem:[%s5] sm:$0xff]
        %v455 = vld [vmem:[%s5 + $0x8] sm:$0xff]
        %v456 = vld [vmem:[%s5 + $0x10] sm:$0xff]
        %v457 = vld [vmem:[%s5 + $0x18] sm:$0xff]
        %v458 = vld [vmem:[%s5 + $0x20] sm:$0xff]
        %v459 = vld [vmem:[%s5 + $0x28] sm:$0xff]
        %v460 = vld [vmem:[%s5 + $0x30] sm:$0xff]
        %v461 = vld [vmem:[%s5 + $0x38] sm:$0xff]
        %v462 = vld [vmem:[%s5 + $0x40] sm:$0xff]
        %v463 = vld [vmem:[%s5 + $0x48] sm:$0xff]
        %v464 = vld [vmem:[%s5 + $0x50] sm:$0xff]
        %v465 = vld [vmem:[%s5 + $0x58] sm:$0xff]
        %v466 = vld [vmem:[%s5 + $0x60] sm:$0xff]
        %v467 = vld [vmem:[%s5 + $0x68] sm:$0xff]
        %v468 = vld [vmem:[%s5 + $0x70] sm:$0xff]
        %v469 = vld [vmem:[%s5 + $0x78] sm:$0xff]
        %v470 = vld [vmem:[%s5 + $0x80] sm:$0xff]
        %v471 = vld [vmem:[%s5 + $0x88] sm:$0xff]
        %v472 = vld [vmem:[%s5 + $0x90] sm:$0xff]
        %v473 = vld [vmem:[%s5 + $0x98] sm:$0xff]
        %v474 = vld [vmem:[%s5 + $0xa0] sm:$0xff]
        %v475 = vld [vmem:[%s5 + $0xa8] sm:$0xff]
        %v476 = vld [vmem:[%s5 + $0xb0] sm:$0xff]
        %v477 = vld [vmem:[%s5 + $0xb8] sm:$0xff]
        %v478 = vld [vmem:[%s5 + $0xc0] sm:$0xff]
        %v479 = vld [vmem:[%s5 + $0xc8] sm:$0xff]
        %v480 = vld [vmem:[%s5 + $0xd0] sm:$0xff]
        %v481 = vld [vmem:[%s5 + $0xd8] sm:$0xff]
        %v482 = vld [vmem:[%s5 + $0xe0] sm:$0xff]
        %v483 = vld [vmem:[%s5 + $0xe8] sm:$0xff]
        %v484 = vld [vmem:[%s5 + $0xf0] sm:$0xff]
        %v485 = vld [vmem:[%s5 + $0xf8] sm:$0xff]
        %486 = vmatprep.subr.mxu0 %v485
        %487 = vmatpush1.msra.mxu0 %v484
        %488 = vmatprep.subr.mxu0 %v483
        %489 = vmatpush1.msra.mxu0 %v482
        %490 = vmatprep.subr.mxu0 %v481
        %491 = vmatpush1.msra.mxu0 %v480
        %492 = vmatprep.subr.mxu0 %v479
        %493 = vmatpush1.msra.mxu0 %v478
        %494 = vmatprep.subr.mxu0 %v477
        %495 = vmatpush1.msra.mxu0 %v476
        %496 = vmatprep.subr.mxu0 %v475
        %497 = vmatpush1.msra.mxu0 %v474
        %498 = vmatprep.subr.mxu0 %v473
        %499 = vmatpush1.msra.mxu0 %v472
        %500 = vmatprep.subr.mxu0 %v471
        %501 = vmatpush1.msra.mxu0 %v470
        %502 = vmatprep.subr.mxu0 %v469
        %503 = vmatpush1.msra.mxu0 %v468
        %504 = vmatprep.subr.mxu0 %v467
        %505 = vmatpush1.msra.mxu0 %v466
        %506 = vmatprep.subr.mxu0 %v465
        %507 = vmatpush1.msra.mxu0 %v464
        %508 = vmatprep.subr.mxu0 %v463
        %509 = vmatpush1.msra.mxu0 %v462
        %510 = vmatprep.subr.mxu0 %v461
        %511 = vmatpush1.msra.mxu0 %v460
        %512 = vmatprep.subr.mxu0 %v459
        %513 = vmatpush1.msra.mxu0 %v458
        %514 = vmatprep.subr.mxu0 %v457
        %515 = vmatpush1.msra.mxu0 %v456
        %516 = vmatprep.subr.mxu0 %v455
        %517 = vmatpush1.msra.mxu0 %v454
        %518 = vmatprep.subr.mxu0 0.0
        %519 = vmatpush2.msra.mxu0 0.0
        %520 = vmatprep.subr.mxu0 0.0
        %521 = vmatpush2.msra.mxu0 0.0
        %522 = vmatprep.subr.mxu0 0.0
        %523 = vmatpush2.msra.mxu0 0.0
        %524 = vmatprep.subr.mxu0 0.0
        %525 = vmatpush2.msra.mxu0 0.0
        %526 = vmatprep.subr.mxu0 0.0
        %527 = vmatpush2.msra.mxu0 0.0
        %528 = vmatprep.subr.mxu0 0.0
        %529 = vmatpush2.msra.mxu0 0.0
        %530 = vmatprep.subr.mxu0 0.0
        %531 = vmatpush2.msra.mxu0 0.0
        %532 = vmatprep.subr.mxu0 0.0
        %533 = vmatpush2.msra.mxu0 0.0
        %534 = vmatprep.subr.mxu0 0.0
        %535 = vmatpush2.msra.mxu0 0.0
        %536 = vmatprep.subr.mxu0 0.0
        %537 = vmatpush2.msra.mxu0 0.0
        %538 = vmatprep.subr.mxu0 0.0
        %539 = vmatpush2.msra.mxu0 0.0
        %540 = vmatprep.subr.mxu0 0.0
        %541 = vmatpush2.msra.mxu0 0.0
        %542 = vmatprep.subr.mxu0 0.0
        %543 = vmatpush2.msra.mxu0 0.0
        %544 = vmatprep.subr.mxu0 0.0
        %545 = vmatpush2.msra.mxu0 0.0
        %546 = vmatprep.subr.mxu0 0.0
        %547 = vmatpush2.msra.mxu0 0.0
        %548 = vmatprep.subr.mxu0 0.0
        %549 = vmatpush2.msra.mxu0 0.0
        %550 = vmatprep.mubr.f32.mxu0 0.0
        %551 = vmatmul.mubr.f32.gmra.mxu0 %v453
        %v552 = vpop.f32.mrf.mxu0
        %v553 = vadd.f32 0.0, %v552
        %v554 = vpop.f32.mrf.mxu0
        %v555 = vadd.f32 0.0, %v554
        %556 = vdwg.mxu0
        %v557 = vld [vmem:[%s6] sm:$0xff]
        %v558 = vld [vmem:[%s6 + $0x8] sm:$0xff]
        %v559 = vld [vmem:[%s6 + $0x10] sm:$0xff]
        %v560 = vld [vmem:[%s6 + $0x18] sm:$0xff]
        %v561 = vld [vmem:[%s6 + $0x20] sm:$0xff]
        %v562 = vld [vmem:[%s6 + $0x28] sm:$0xff]
        %v563 = vld [vmem:[%s6 + $0x30] sm:$0xff]
        %v564 = vld [vmem:[%s6 + $0x38] sm:$0xff]
        %v565 = vld [vmem:[%s6 + $0x40] sm:$0xff]
        %v566 = vld [vmem:[%s6 + $0x48] sm:$0xff]
        %v567 = vld [vmem:[%s6 + $0x50] sm:$0xff]
        %v568 = vld [vmem:[%s6 + $0x58] sm:$0xff]
        %v569 = vld [vmem:[%s6 + $0x60] sm:$0xff]
        %v570 = vld [vmem:[%s6 + $0x68] sm:$0xff]
        %v571 = vld [vmem:[%s6 + $0x70] sm:$0xff]
        %v572 = vld [vmem:[%s6 + $0x78] sm:$0xff]
        %v573 = vld [vmem:[%s6 + $0x80] sm:$0xff]
        %v574 = vld [vmem:[%s6 + $0x88] sm:$0xff]
        %v575 = vld [vmem:[%s6 + $0x90] sm:$0xff]
        %v576 = vld [vmem:[%s6 + $0x98] sm:$0xff]
        %v577 = vld [vmem:[%s6 + $0xa0] sm:$0xff]
        %v578 = vld [vmem:[%s6 + $0xa8] sm:$0xff]
        %v579 = vld [vmem:[%s6 + $0xb0] sm:$0xff]
        %v580 = vld [vmem:[%s6 + $0xb8] sm:$0xff]
        %v581 = vld [vmem:[%s6 + $0xc0] sm:$0xff]
        %v582 = vld [vmem:[%s6 + $0xc8] sm:$0xff]
        %v583 = vld [vmem:[%s6 + $0xd0] sm:$0xff]
        %v584 = vld [vmem:[%s6 + $0xd8] sm:$0xff]
        %v585 = vld [vmem:[%s6 + $0xe0] sm:$0xff]
        %v586 = vld [vmem:[%s6 + $0xe8] sm:$0xff]
        %v587 = vld [vmem:[%s6 + $0xf0] sm:$0xff]
        %v588 = vld [vmem:[%s6 + $0xf8] sm:$0xff]
        %589 = vmatprep.subr.mxu0 %v588
        %590 = vmatpush1.msra.mxu0 %v587
        %591 = vmatprep.subr.mxu0 %v586
        %592 = vmatpush1.msra.mxu0 %v585
        %593 = vmatprep.subr.mxu0 %v584
        %594 = vmatpush1.msra.mxu0 %v583
        %595 = vmatprep.subr.mxu0 %v582
        %596 = vmatpush1.msra.mxu0 %v581
        %597 = vmatprep.subr.mxu0 %v580
        %598 = vmatpush1.msra.mxu0 %v579
        %599 = vmatprep.subr.mxu0 %v578
        %600 = vmatpush1.msra.mxu0 %v577
        %601 = vmatprep.subr.mxu0 %v576
        %602 = vmatpush1.msra.mxu0 %v575
        %603 = vmatprep.subr.mxu0 %v574
        %604 = vmatpush1.msra.mxu0 %v573
        %605 = vmatprep.subr.mxu0 %v572
        %606 = vmatpush1.msra.mxu0 %v571
        %607 = vmatprep.subr.mxu0 %v570
        %608 = vmatpush1.msra.mxu0 %v569
        %609 = vmatprep.subr.mxu0 %v568
        %610 = vmatpush1.msra.mxu0 %v567
        %611 = vmatprep.subr.mxu0 %v566
        %612 = vmatpush1.msra.mxu0 %v565
        %613 = vmatprep.subr.mxu0 %v564
        %614 = vmatpush1.msra.mxu0 %v563
        %615 = vmatprep.subr.mxu0 %v562
        %616 = vmatpush1.msra.mxu0 %v561
        %617 = vmatprep.subr.mxu0 %v560
        %618 = vmatpush1.msra.mxu0 %v559
        %619 = vmatprep.subr.mxu0 %v558
        %620 = vmatpush1.msra.mxu0 %v557
        %621 = vmatprep.subr.mxu0 0.0
        %622 = vmatpush2.msra.mxu0 0.0
        %623 = vmatprep.subr.mxu0 0.0
        %624 = vmatpush2.msra.mxu0 0.0
        %625 = vmatprep.subr.mxu0 0.0
        %626 = vmatpush2.msra.mxu0 0.0
        %627 = vmatprep.subr.mxu0 0.0
        %628 = vmatpush2.msra.mxu0 0.0
        %629 = vmatprep.subr.mxu0 0.0
        %630 = vmatpush2.msra.mxu0 0.0
        %631 = vmatprep.subr.mxu0 0.0
        %632 = vmatpush2.msra.mxu0 0.0
        %633 = vmatprep.subr.mxu0 0.0
        %634 = vmatpush2.msra.mxu0 0.0
        %635 = vmatprep.subr.mxu0 0.0
        %636 = vmatpush2.msra.mxu0 0.0
        %637 = vmatprep.subr.mxu0 0.0
        %638 = vmatpush2.msra.mxu0 0.0
        %639 = vmatprep.subr.mxu0 0.0
        %640 = vmatpush2.msra.mxu0 0.0
        %641 = vmatprep.subr.mxu0 0.0
        %642 = vmatpush2.msra.mxu0 0.0
        %643 = vmatprep.subr.mxu0 0.0
        %644 = vmatpush2.msra.mxu0 0.0
        %645 = vmatprep.subr.mxu0 0.0
        %646 = vmatpush2.msra.mxu0 0.0
        %647 = vmatprep.subr.mxu0 0.0
        %648 = vmatpush2.msra.mxu0 0.0
        %649 = vmatprep.subr.mxu0 0.0
        %650 = vmatpush2.msra.mxu0 0.0
        %651 = vmatprep.subr.mxu0 0.0
        %652 = vmatpush2.msra.mxu0 0.0
        %653 = vmatprep.mubr.f32.mxu0 0.0
        %654 = vmatmul.mubr.f32.gmra.mxu0 %v453
        %v655 = vpop.f32.mrf.mxu0
        %v656 = vadd.f32 0.0, %v655
        %v657 = vpop.f32.mrf.mxu0
        %v658 = vadd.f32 0.0, %v657
        %659 = vdwg.mxu0
        %v660 = vld [vmem:[%s1] sm:$0xff]
        %v661 = vld [vmem:[%s2] sm:$0xff]
        %663 = vrot.lane.b32.xlu0 %v660, 32
        %v664 = vpop.permute.xlu0 %663
        %666 = vrot.lane.b32.xlu0 %v660, 64
        %v667 = vpop.permute.xlu0 %666
        %669 = vrot.lane.b32.xlu0 %v660, 96
        %v670 = vpop.permute.xlu0 %669
        %vm672 = vcmask 261120
        %v673 = vsel %vm672, %v660, %v664
        %vm674 = vcmask 523264
        %v675 = vsel %vm674, %v673, %v667
        %vm676 = vcmask 785408
        %v677 = vsel %vm676, %v675, %v670
        %679 = vrot.lane.b32.xlu0 %v661, 32
        %v680 = vpop.permute.xlu0 %679
        %682 = vrot.lane.b32.xlu0 %v661, 64
        %v683 = vpop.permute.xlu0 %682
        %685 = vrot.lane.b32.xlu0 %v661, 96
        %v686 = vpop.permute.xlu0 %685
        %v688 = vsel %vm672, %v661, %v680
        %v689 = vsel %vm674, %v688, %v683
        %v690 = vsel %vm676, %v689, %v686
        %v691 = vmul.f32 %v553, %v677
        %v692 = vmul.f32 %v555, %v690
        %v693 = vadd.f32 %v691, %v692
        %v694 = vmul.f32 %v656, %v673
        %696 = vrot.lane.b32.xlu0 %v688, 64
        %v697 = vpop.permute.xlu0 %696
        %v699 = vmul.f32 %v656, %v697
        %701 = vrot.lane.b32.xlu0 %v699, 64
        %v702 = vpop.permute.xlu0 %701
        %v704 = vadd.f32 %v694, %v702
        %v705 = vlaneseq
        %v706 = vshrl.u32 %v705, 7
        %v707 = vlaneseq
        %v708 = vand.u32 %v707, 127
        %vm709 = vcmp.ge.s32.totalorder %v706, %v708
        %v710 = vsel %vm709, 0.0, -3.4028235e+38
        %v712 = vsel %vm672, %v693, 0
        %v715 = vsel %vm672, %v704, 0
        %717 = vmatprep.subr.mxu0 0.0
        %718 = vmatpush1.xpose.msra.mxu0 0.0
        %719 = vmatprep.subr.mxu0 0.0
        %720 = vmatpush1.xpose.msra.mxu0 0.0
        %721 = vmatprep.subr.mxu0 0.0
        %722 = vmatpush1.xpose.msra.mxu0 0.0
        %723 = vmatprep.subr.mxu0 0.0
        %724 = vmatpush1.xpose.msra.mxu0 0.0
        %725 = vmatprep.subr.mxu0 0.0
        %726 = vmatpush1.xpose.msra.mxu0 0.0
        %727 = vmatprep.subr.mxu0 0.0
        %728 = vmatpush1.xpose.msra.mxu0 0.0
        %729 = vmatprep.subr.mxu0 0.0
        %730 = vmatpush1.xpose.msra.mxu0 0.0
        %731 = vmatprep.subr.mxu0 0.0
        %732 = vmatpush1.xpose.msra.mxu0 0.0
        %733 = vmatprep.subr.mxu0 0.0
        %734 = vmatpush1.xpose.msra.mxu0 0.0
        %735 = vmatprep.subr.mxu0 0.0
        %736 = vmatpush1.xpose.msra.mxu0 0.0
        %737 = vmatprep.subr.mxu0 0.0
        %738 = vmatpush1.xpose.msra.mxu0 0.0
        %739 = vmatprep.subr.mxu0 0.0
        %740 = vmatpush1.xpose.msra.mxu0 0.0
        %741 = vmatprep.subr.mxu0 0.0
        %742 = vmatpush1.xpose.msra.mxu0 0.0
        %743 = vmatprep.subr.mxu0 0.0
        %744 = vmatpush1.xpose.msra.mxu0 0.0
        %745 = vmatprep.subr.mxu0 0.0
        %746 = vmatpush1.xpose.msra.mxu0 0.0
        %747 = vmatprep.subr.mxu0 0.0
        %748 = vmatpush1.xpose.msra.mxu0 %v715
        %749 = vmatprep.subr.mxu0 0.0
        %750 = vmatpush2.xpose.msra.mxu0 0.0
        %751 = vmatprep.subr.mxu0 0.0
        %752 = vmatpush2.xpose.msra.mxu0 0.0
        %753 = vmatprep.subr.mxu0 0.0
        %754 = vmatpush2.xpose.msra.mxu0 0.0
        %755 = vmatprep.subr.mxu0 0.0
        %756 = vmatpush2.xpose.msra.mxu0 0.0
        %757 = vmatprep.subr.mxu0 0.0
        %758 = vmatpush2.xpose.msra.mxu0 0.0
        %759 = vmatprep.subr.mxu0 0.0
        %760 = vmatpush2.xpose.msra.mxu0 0.0
        %761 = vmatprep.subr.mxu0 0.0
        %762 = vmatpush2.xpose.msra.mxu0 0.0
        %763 = vmatprep.subr.mxu0 0.0
        %764 = vmatpush2.xpose.msra.mxu0 0.0
        %765 = vmatprep.subr.mxu0 0.0
        %766 = vmatpush2.xpose.msra.mxu0 0.0
        %767 = vmatprep.subr.mxu0 0.0
        %768 = vmatpush2.xpose.msra.mxu0 0.0
        %769 = vmatprep.subr.mxu0 0.0
        %770 = vmatpush2.xpose.msra.mxu0 0.0
        %771 = vmatprep.subr.mxu0 0.0
        %772 = vmatpush2.xpose.msra.mxu0 0.0
        %773 = vmatprep.subr.mxu0 0.0
        %774 = vmatpush2.xpose.msra.mxu0 0.0
        %775 = vmatprep.subr.mxu0 0.0
        %776 = vmatpush2.xpose.msra.mxu0 0.0
        %777 = vmatprep.subr.mxu0 0.0
        %778 = vmatpush2.xpose.msra.mxu0 0.0
        %779 = vmatprep.subr.mxu0 0.0
        %780 = vmatpush2.xpose.msra.mxu0 0.0
        %781 = vmatprep.mubr.f32.mxu0 0.0
        %782 = vmatmul.mubr.f32.gmra.mxu0 %v712
        %v783 = vpop.f32.mrf.mxu0
        %v784 = vadd.f32 %v710, %v783
        %v785 = vpop.f32.mrf.mxu0
        %786 = vdwg.mxu0
        %vm787 = vcmask 64512
        %v788 = vsel %vm787, %v784, -inf
        %789 = vmax.xlane.f32.xlu0 %v788
        %v790 = vpop.xlane.xlu0 %789
        %v791 = vsub.f32 %v784, %v790
        %v792 = vmul.f32 %v791, 1.442695
        %v793 = vpow.pop %v792
        %v794 = vsel %vm787, %v793, 0.0
        %795 = vadd.xlane.f32.xlu0 %v794
        %v796 = vpop.xlane.xlu0 %795
        %v797 = vrcp.pop %v796
        %v798 = vmul.f32 %v793, %v797
        %v800 = vsel %vm787, %v798, 0
        %802 = vmatprep.subr.mxu0 0.0
        %803 = vmatpush1.msra.mxu0 0.0
        %804 = vmatprep.subr.mxu0 0.0
        %805 = vmatpush1.msra.mxu0 0.0
        %806 = vmatprep.subr.mxu0 0.0
        %807 = vmatpush1.msra.mxu0 0.0
        %808 = vmatprep.subr.mxu0 0.0
        %809 = vmatpush1.msra.mxu0 0.0
        %810 = vmatprep.subr.mxu0 0.0
        %811 = vmatpush1.msra.mxu0 0.0
        %812 = vmatprep.subr.mxu0 0.0
        %813 = vmatpush1.msra.mxu0 0.0
        %814 = vmatprep.subr.mxu0 0.0
        %815 = vmatpush1.msra.mxu0 0.0
        %816 = vmatprep.subr.mxu0 0.0
        %817 = vmatpush1.msra.mxu0 0.0
        %818 = vmatprep.subr.mxu0 0.0
        %819 = vmatpush1.msra.mxu0 0.0
        %820 = vmatprep.subr.mxu0 0.0
        %821 = vmatpush1.msra.mxu0 0.0
        %822 = vmatprep.subr.mxu0 0.0
        %823 = vmatpush1.msra.mxu0 0.0
        %824 = vmatprep.subr.mxu0 0.0
        %825 = vmatpush1.msra.mxu0 0.0
        %826 = vmatprep.subr.mxu0 0.0
        %827 = vmatpush1.msra.mxu0 0.0
        %828 = vmatprep.subr.mxu0 0.0
        %829 = vmatpush1.msra.mxu0 0.0
        %830 = vmatprep.subr.mxu0 0.0
        %831 = vmatpush1.msra.mxu0 0.0
        %832 = vmatprep.subr.mxu0 0.0
        %833 = vmatpush1.msra.mxu0 %v658
        %834 = vmatprep.subr.mxu0 0.0
        %835 = vmatpush2.msra.mxu0 0.0
        %836 = vmatprep.subr.mxu0 0.0
        %837 = vmatpush2.msra.mxu0 0.0
        %838 = vmatprep.subr.mxu0 0.0
        %839 = vmatpush2.msra.mxu0 0.0
        %840 = vmatprep.subr.mxu0 0.0
        %841 = vmatpush2.msra.mxu0 0.0
        %842 = vmatprep.subr.mxu0 0.0
        %843 = vmatpush2.msra.mxu0 0.0
        %844 = vmatprep.subr.mxu0 0.0
        %845 = vmatpush2.msra.mxu0 0.0
        %846 = vmatprep.subr.mxu0 0.0
        %847 = vmatpush2.msra.mxu0 0.0
        %848 = vmatprep.subr.mxu0 0.0
        %849 = vmatpush2.msra.mxu0 0.0
        %850 = vmatprep.subr.mxu0 0.0
        %851 = vmatpush2.msra.mxu0 0.0
        %852 = vmatprep.subr.mxu0 0.0
        %853 = vmatpush2.msra.mxu0 0.0
        %854 = vmatprep.subr.mxu0 0.0
        %855 = vmatpush2.msra.mxu0 0.0
        %856 = vmatprep.subr.mxu0 0.0
        %857 = vmatpush2.msra.mxu0 0.0
        %858 = vmatprep.subr.mxu0 0.0
        %859 = vmatpush2.msra.mxu0 0.0
        %860 = vmatprep.subr.mxu0 0.0
        %861 = vmatpush2.msra.mxu0 0.0
        %862 = vmatprep.subr.mxu0 0.0
        %863 = vmatpush2.msra.mxu0 0.0
        %864 = vmatprep.subr.mxu0 0.0
        %865 = vmatpush2.msra.mxu0 0.0
        %866 = vmatprep.mubr.f32.mxu0 0.0
        %867 = vmatmul.mubr.f32.gmra.mxu0 %v800
        %v868 = vpop.f32.mrf.mxu0
        %v869 = vadd.f32 0.0, %v868
        %v870 = vpop.f32.mrf.mxu0
        %871 = vdwg.mxu0
        %872 = vrot.lane.b32.xlu0 %v693, 96
        %v873 = vpop.permute.xlu0 %872
        %v874 = vsel %vm672, %v873, 0
        %876 = vmatprep.subr.mxu0 0.0
        %877 = vmatpush1.xpose.msra.mxu0 0.0
        %878 = vmatprep.subr.mxu0 0.0
        %879 = vmatpush1.xpose.msra.mxu0 0.0
        %880 = vmatprep.subr.mxu0 0.0
        %881 = vmatpush1.xpose.msra.mxu0 0.0
        %882 = vmatprep.subr.mxu0 0.0
        %883 = vmatpush1.xpose.msra.mxu0 0.0
        %884 = vmatprep.subr.mxu0 0.0
        %885 = vmatpush1.xpose.msra.mxu0 0.0
        %886 = vmatprep.subr.mxu0 0.0
        %887 = vmatpush1.xpose.msra.mxu0 0.0
        %888 = vmatprep.subr.mxu0 0.0
        %889 = vmatpush1.xpose.msra.mxu0 0.0
        %890 = vmatprep.subr.mxu0 0.0
        %891 = vmatpush1.xpose.msra.mxu0 0.0
        %892 = vmatprep.subr.mxu0 0.0
        %893 = vmatpush1.xpose.msra.mxu0 0.0
        %894 = vmatprep.subr.mxu0 0.0
        %895 = vmatpush1.xpose.msra.mxu0 0.0
        %896 = vmatprep.subr.mxu0 0.0
        %897 = vmatpush1.xpose.msra.mxu0 0.0
        %898 = vmatprep.subr.mxu0 0.0
        %899 = vmatpush1.xpose.msra.mxu0 0.0
        %900 = vmatprep.subr.mxu0 0.0
        %901 = vmatpush1.xpose.msra.mxu0 0.0
        %902 = vmatprep.subr.mxu0 0.0
        %903 = vmatpush1.xpose.msra.mxu0 0.0
        %904 = vmatprep.subr.mxu0 0.0
        %905 = vmatpush1.xpose.msra.mxu0 0.0
        %906 = vmatprep.subr.mxu0 0.0
        %907 = vmatpush1.xpose.msra.mxu0 %v715
        %908 = vmatprep.subr.mxu0 0.0
        %909 = vmatpush2.xpose.msra.mxu0 0.0
        %910 = vmatprep.subr.mxu0 0.0
        %911 = vmatpush2.xpose.msra.mxu0 0.0
        %912 = vmatprep.subr.mxu0 0.0
        %913 = vmatpush2.xpose.msra.mxu0 0.0
        %914 = vmatprep.subr.mxu0 0.0
        %915 = vmatpush2.xpose.msra.mxu0 0.0
        %916 = vmatprep.subr.mxu0 0.0
        %917 = vmatpush2.xpose.msra.mxu0 0.0
        %918 = vmatprep.subr.mxu0 0.0
        %919 = vmatpush2.xpose.msra.mxu0 0.0
        %920 = vmatprep.subr.mxu0 0.0
        %921 = vmatpush2.xpose.msra.mxu0 0.0
        %922 = vmatprep.subr.mxu0 0.0
        %923 = vmatpush2.xpose.msra.mxu0 0.0
        %924 = vmatprep.subr.mxu0 0.0
        %925 = vmatpush2.xpose.msra.mxu0 0.0
        %926 = vmatprep.subr.mxu0 0.0
        %927 = vmatpush2.xpose.msra.mxu0 0.0
        %928 = vmatprep.subr.mxu0 0.0
        %929 = vmatpush2.xpose.msra.mxu0 0.0
        %930 = vmatprep.subr.mxu0 0.0
        %931 = vmatpush2.xpose.msra.mxu0 0.0
        %932 = vmatprep.subr.mxu0 0.0
        %933 = vmatpush2.xpose.msra.mxu0 0.0
        %934 = vmatprep.subr.mxu0 0.0
        %935 = vmatpush2.xpose.msra.mxu0 0.0
        %936 = vmatprep.subr.mxu0 0.0
        %937 = vmatpush2.xpose.msra.mxu0 0.0
        %938 = vmatprep.subr.mxu0 0.0
        %939 = vmatpush2.xpose.msra.mxu0 0.0
        %940 = vmatprep.mubr.f32.mxu0 0.0
        %941 = vmatmul.mubr.f32.gmra.mxu0 %v874
        %v942 = vpop.f32.mrf.mxu0
        %v943 = vadd.f32 %v710, %v942
        %v944 = vpop.f32.mrf.mxu0
        %945 = vdwg.mxu0
        %v946 = vsel %vm787, %v943, -inf
        %947 = vmax.xlane.f32.xlu0 %v946
        %v948 = vpop.xlane.xlu0 %947
        %v949 = vsub.f32 %v943, %v948
        %v950 = vmul.f32 %v949, 1.442695
        %v951 = vpow.pop %v950
        %v952 = vsel %vm787, %v951, 0.0
        %953 = vadd.xlane.f32.xlu0 %v952
        %v954 = vpop.xlane.xlu0 %953
        %v955 = vrcp.pop %v954
        %v956 = vmul.f32 %v951, %v955
        %v958 = vsel %vm787, %v956, 0
        %960 = vmatprep.subr.mxu0 0.0
        %961 = vmatpush1.msra.mxu0 0.0
        %962 = vmatprep.subr.mxu0 0.0
        %963 = vmatpush1.msra.mxu0 0.0
        %964 = vmatprep.subr.mxu0 0.0
        %965 = vmatpush1.msra.mxu0 0.0
        %966 = vmatprep.subr.mxu0 0.0
        %967 = vmatpush1.msra.mxu0 0.0
        %968 = vmatprep.subr.mxu0 0.0
        %969 = vmatpush1.msra.mxu0 0.0
        %970 = vmatprep.subr.mxu0 0.0
        %971 = vmatpush1.msra.mxu0 0.0
        %972 = vmatprep.subr.mxu0 0.0
        %973 = vmatpush1.msra.mxu0 0.0
        %974 = vmatprep.subr.mxu0 0.0
        %975 = vmatpush1.msra.mxu0 0.0
        %976 = vmatprep.subr.mxu0 0.0
        %977 = vmatpush1.msra.mxu0 0.0
        %978 = vmatprep.subr.mxu0 0.0
        %979 = vmatpush1.msra.mxu0 0.0
        %980 = vmatprep.subr.mxu0 0.0
        %981 = vmatpush1.msra.mxu0 0.0
        %982 = vmatprep.subr.mxu0 0.0
        %983 = vmatpush1.msra.mxu0 0.0
        %984 = vmatprep.subr.mxu0 0.0
        %985 = vmatpush1.msra.mxu0 0.0
        %986 = vmatprep.subr.mxu0 0.0
        %987 = vmatpush1.msra.mxu0 0.0
        %988 = vmatprep.subr.mxu0 0.0
        %989 = vmatpush1.msra.mxu0 0.0
        %990 = vmatprep.subr.mxu0 0.0
        %991 = vmatpush1.msra.mxu0 %v658
        %992 = vmatprep.subr.mxu0 0.0
        %993 = vmatpush2.msra.mxu0 0.0
        %994 = vmatprep.subr.mxu0 0.0
        %995 = vmatpush2.msra.mxu0 0.0
        %996 = vmatprep.subr.mxu0 0.0
        %997 = vmatpush2.msra.mxu0 0.0
        %998 = vmatprep.subr.mxu0 0.0
        %999 = vmatpush2.msra.mxu0 0.0
        %1000 = vmatprep.subr.mxu0 0.0
        %1001 = vmatpush2.msra.mxu0 0.0
        %1002 = vmatprep.subr.mxu0 0.0
        %1003 = vmatpush2.msra.mxu0 0.0
        %1004 = vmatprep.subr.mxu0 0.0
        %1005 = vmatpush2.msra.mxu0 0.0
        %1006 = vmatprep.subr.mxu0 0.0
        %1007 = vmatpush2.msra.mxu0 0.0
        %1008 = vmatprep.subr.mxu0 0.0
        %1009 = vmatpush2.msra.mxu0 0.0
        %1010 = vmatprep.subr.mxu0 0.0
        %1011 = vmatpush2.msra.mxu0 0.0
        %1012 = vmatprep.subr.mxu0 0.0
        %1013 = vmatpush2.msra.mxu0 0.0
        %1014 = vmatprep.subr.mxu0 0.0
        %1015 = vmatpush2.msra.mxu0 0.0
        %1016 = vmatprep.subr.mxu0 0.0
        %1017 = vmatpush2.msra.mxu0 0.0
        %1018 = vmatprep.subr.mxu0 0.0
        %1019 = vmatpush2.msra.mxu0 0.0
        %1020 = vmatprep.subr.mxu0 0.0
        %1021 = vmatpush2.msra.mxu0 0.0
        %1022 = vmatprep.subr.mxu0 0.0
        %1023 = vmatpush2.msra.mxu0 0.0
        %1024 = vmatprep.mubr.f32.mxu0 0.0
        %1025 = vmatmul.mubr.f32.gmra.mxu0 %v958
        %v1026 = vpop.f32.mrf.mxu0
        %v1027 = vadd.f32 0.0, %v1026
        %v1028 = vpop.f32.mrf.mxu0
        %1029 = vdwg.mxu0
        %1030 = vrot.lane.b32.xlu0 %v693, 64
        %v1031 = vpop.permute.xlu0 %1030
        %1032 = vrot.lane.b32.xlu0 %v704, 96
        %v1033 = vpop.permute.xlu0 %1032
        %v1034 = vsel %vm672, %v1031, 0
        %v1036 = vsel %vm672, %v1033, 0
        %1038 = vmatprep.subr.mxu0 0.0
        %1039 = vmatpush1.xpose.msra.mxu0 0.0
        %1040 = vmatprep.subr.mxu0 0.0
        %1041 = vmatpush1.xpose.msra.mxu0 0.0
        %1042 = vmatprep.subr.mxu0 0.0
        %1043 = vmatpush1.xpose.msra.mxu0 0.0
        %1044 = vmatprep.subr.mxu0 0.0
        %1045 = vmatpush1.xpose.msra.mxu0 0.0
        %1046 = vmatprep.subr.mxu0 0.0
        %1047 = vmatpush1.xpose.msra.mxu0 0.0
        %1048 = vmatprep.subr.mxu0 0.0
        %1049 = vmatpush1.xpose.msra.mxu0 0.0
        %1050 = vmatprep.subr.mxu0 0.0
        %1051 = vmatpush1.xpose.msra.mxu0 0.0
        %1052 = vmatprep.subr.mxu0 0.0
        %1053 = vmatpush1.xpose.msra.mxu0 0.0
        %1054 = vmatprep.subr.mxu0 0.0
        %1055 = vmatpush1.xpose.msra.mxu0 0.0
        %1056 = vmatprep.subr.mxu0 0.0
        %1057 = vmatpush1.xpose.msra.mxu0 0.0
        %1058 = vmatprep.subr.mxu0 0.0
        %1059 = vmatpush1.xpose.msra.mxu0 0.0
        %1060 = vmatprep.subr.mxu0 0.0
        %1061 = vmatpush1.xpose.msra.mxu0 0.0
        %1062 = vmatprep.subr.mxu0 0.0
        %1063 = vmatpush1.xpose.msra.mxu0 0.0
        %1064 = vmatprep.subr.mxu0 0.0
        %1065 = vmatpush1.xpose.msra.mxu0 0.0
        %1066 = vmatprep.subr.mxu0 0.0
        %1067 = vmatpush1.xpose.msra.mxu0 0.0
        %1068 = vmatprep.subr.mxu0 0.0
        %1069 = vmatpush1.xpose.msra.mxu0 %v1036
        %1070 = vmatprep.subr.mxu0 0.0
        %1071 = vmatpush2.xpose.msra.mxu0 0.0
        %1072 = vmatprep.subr.mxu0 0.0
        %1073 = vmatpush2.xpose.msra.mxu0 0.0
        %1074 = vmatprep.subr.mxu0 0.0
        %1075 = vmatpush2.xpose.msra.mxu0 0.0
        %1076 = vmatprep.subr.mxu0 0.0
        %1077 = vmatpush2.xpose.msra.mxu0 0.0
        %1078 = vmatprep.subr.mxu0 0.0
        %1079 = vmatpush2.xpose.msra.mxu0 0.0
        %1080 = vmatprep.subr.mxu0 0.0
        %1081 = vmatpush2.xpose.msra.mxu0 0.0
        %1082 = vmatprep.subr.mxu0 0.0
        %1083 = vmatpush2.xpose.msra.mxu0 0.0
        %1084 = vmatprep.subr.mxu0 0.0
        %1085 = vmatpush2.xpose.msra.mxu0 0.0
        %1086 = vmatprep.subr.mxu0 0.0
        %1087 = vmatpush2.xpose.msra.mxu0 0.0
        %1088 = vmatprep.subr.mxu0 0.0
        %1089 = vmatpush2.xpose.msra.mxu0 0.0
        %1090 = vmatprep.subr.mxu0 0.0
        %1091 = vmatpush2.xpose.msra.mxu0 0.0
        %1092 = vmatprep.subr.mxu0 0.0
        %1093 = vmatpush2.xpose.msra.mxu0 0.0
        %1094 = vmatprep.subr.mxu0 0.0
        %1095 = vmatpush2.xpose.msra.mxu0 0.0
        %1096 = vmatprep.subr.mxu0 0.0
        %1097 = vmatpush2.xpose.msra.mxu0 0.0
        %1098 = vmatprep.subr.mxu0 0.0
        %1099 = vmatpush2.xpose.msra.mxu0 0.0
        %1100 = vmatprep.subr.mxu0 0.0
        %1101 = vmatpush2.xpose.msra.mxu0 0.0
        %1102 = vmatprep.mubr.f32.mxu0 0.0
        %1103 = vmatmul.mubr.f32.gmra.mxu0 %v1034
        %v1104 = vpop.f32.mrf.mxu0
        %v1105 = vadd.f32 %v710, %v1104
        %v1106 = vpop.f32.mrf.mxu0
        %1107 = vdwg.mxu0
        %v1108 = vsel %vm787, %v1105, -inf
        %1109 = vmax.xlane.f32.xlu0 %v1108
        %v1110 = vpop.xlane.xlu0 %1109
        %v1111 = vsub.f32 %v1105, %v1110
        %v1112 = vmul.f32 %v1111, 1.442695
        %v1113 = vpow.pop %v1112
        %v1114 = vsel %vm787, %v1113, 0.0
        %1115 = vadd.xlane.f32.xlu0 %v1114
        %v1116 = vpop.xlane.xlu0 %1115
        %v1117 = vrcp.pop %v1116
        %v1118 = vmul.f32 %v1113, %v1117
        %1120 = vrot.lane.b32.xlu0 %v658, 96
        %v1121 = vpop.permute.xlu0 %1120
        %v1124 = vsel %vm787, %v1118, 0
        %1126 = vmatprep.subr.mxu0 0.0
        %1127 = vmatpush1.msra.mxu0 0.0
        %1128 = vmatprep.subr.mxu0 0.0
        %1129 = vmatpush1.msra.mxu0 0.0
        %1130 = vmatprep.subr.mxu0 0.0
        %1131 = vmatpush1.msra.mxu0 0.0
        %1132 = vmatprep.subr.mxu0 0.0
        %1133 = vmatpush1.msra.mxu0 0.0
        %1134 = vmatprep.subr.mxu0 0.0
        %1135 = vmatpush1.msra.mxu0 0.0
        %1136 = vmatprep.subr.mxu0 0.0
        %1137 = vmatpush1.msra.mxu0 0.0
        %1138 = vmatprep.subr.mxu0 0.0
        %1139 = vmatpush1.msra.mxu0 0.0
        %1140 = vmatprep.subr.mxu0 0.0
        %1141 = vmatpush1.msra.mxu0 0.0
        %1142 = vmatprep.subr.mxu0 0.0
        %1143 = vmatpush1.msra.mxu0 0.0
        %1144 = vmatprep.subr.mxu0 0.0
        %1145 = vmatpush1.msra.mxu0 0.0
        %1146 = vmatprep.subr.mxu0 0.0
        %1147 = vmatpush1.msra.mxu0 0.0
        %1148 = vmatprep.subr.mxu0 0.0
        %1149 = vmatpush1.msra.mxu0 0.0
        %1150 = vmatprep.subr.mxu0 0.0
        %1151 = vmatpush1.msra.mxu0 0.0
        %1152 = vmatprep.subr.mxu0 0.0
        %1153 = vmatpush1.msra.mxu0 0.0
        %1154 = vmatprep.subr.mxu0 0.0
        %1155 = vmatpush1.msra.mxu0 0.0
        %1156 = vmatprep.subr.mxu0 0.0
        %1157 = vmatpush1.msra.mxu0 %v1121
        %1158 = vmatprep.subr.mxu0 0.0
        %1159 = vmatpush2.msra.mxu0 0.0
        %1160 = vmatprep.subr.mxu0 0.0
        %1161 = vmatpush2.msra.mxu0 0.0
        %1162 = vmatprep.subr.mxu0 0.0
        %1163 = vmatpush2.msra.mxu0 0.0
        %1164 = vmatprep.subr.mxu0 0.0
        %1165 = vmatpush2.msra.mxu0 0.0
        %1166 = vmatprep.subr.mxu0 0.0
        %1167 = vmatpush2.msra.mxu0 0.0
        %1168 = vmatprep.subr.mxu0 0.0
        %1169 = vmatpush2.msra.mxu0 0.0
        %1170 = vmatprep.subr.mxu0 0.0
        %1171 = vmatpush2.msra.mxu0 0.0
        %1172 = vmatprep.subr.mxu0 0.0
        %1173 = vmatpush2.msra.mxu0 0.0
        %1174 = vmatprep.subr.mxu0 0.0
        %1175 = vmatpush2.msra.mxu0 0.0
        %1176 = vmatprep.subr.mxu0 0.0
        %1177 = vmatpush2.msra.mxu0 0.0
        %1178 = vmatprep.subr.mxu0 0.0
        %1179 = vmatpush2.msra.mxu0 0.0
        %1180 = vmatprep.subr.mxu0 0.0
        %1181 = vmatpush2.msra.mxu0 0.0
        %1182 = vmatprep.subr.mxu0 0.0
        %1183 = vmatpush2.msra.mxu0 0.0
        %1184 = vmatprep.subr.mxu0 0.0
        %1185 = vmatpush2.msra.mxu0 0.0
        %1186 = vmatprep.subr.mxu0 0.0
        %1187 = vmatpush2.msra.mxu0 0.0
        %1188 = vmatprep.subr.mxu0 0.0
        %1189 = vmatpush2.msra.mxu0 0.0
        %1190 = vmatprep.mubr.f32.mxu0 0.0
        %1191 = vmatmul.mubr.f32.gmra.mxu0 %v1124
        %v1192 = vpop.f32.mrf.mxu0
        %v1193 = vadd.f32 0.0, %v1192
        %v1194 = vpop.f32.mrf.mxu0
        %1195 = vdwg.mxu0
        %1196 = vrot.lane.b32.xlu0 %v693, 32
        %v1197 = vpop.permute.xlu0 %1196
        %v1198 = vsel %vm672, %v1197, 0
        %1200 = vmatprep.subr.mxu0 0.0
        %1201 = vmatpush1.xpose.msra.mxu0 0.0
        %1202 = vmatprep.subr.mxu0 0.0
        %1203 = vmatpush1.xpose.msra.mxu0 0.0
        %1204 = vmatprep.subr.mxu0 0.0
        %1205 = vmatpush1.xpose.msra.mxu0 0.0
        %1206 = vmatprep.subr.mxu0 0.0
        %1207 = vmatpush1.xpose.msra.mxu0 0.0
        %1208 = vmatprep.subr.mxu0 0.0
        %1209 = vmatpush1.xpose.msra.mxu0 0.0
        %1210 = vmatprep.subr.mxu0 0.0
        %1211 = vmatpush1.xpose.msra.mxu0 0.0
        %1212 = vmatprep.subr.mxu0 0.0
        %1213 = vmatpush1.xpose.msra.mxu0 0.0
        %1214 = vmatprep.subr.mxu0 0.0
        %1215 = vmatpush1.xpose.msra.mxu0 0.0
        %1216 = vmatprep.subr.mxu0 0.0
        %1217 = vmatpush1.xpose.msra.mxu0 0.0
        %1218 = vmatprep.subr.mxu0 0.0
        %1219 = vmatpush1.xpose.msra.mxu0 0.0
        %1220 = vmatprep.subr.mxu0 0.0
        %1221 = vmatpush1.xpose.msra.mxu0 0.0
        %1222 = vmatprep.subr.mxu0 0.0
        %1223 = vmatpush1.xpose.msra.mxu0 0.0
        %1224 = vmatprep.subr.mxu0 0.0
        %1225 = vmatpush1.xpose.msra.mxu0 0.0
        %1226 = vmatprep.subr.mxu0 0.0
        %1227 = vmatpush1.xpose.msra.mxu0 0.0
        %1228 = vmatprep.subr.mxu0 0.0
        %1229 = vmatpush1.xpose.msra.mxu0 0.0
        %1230 = vmatprep.subr.mxu0 0.0
        %1231 = vmatpush1.xpose.msra.mxu0 %v1036
        %1232 = vmatprep.subr.mxu0 0.0
        %1233 = vmatpush2.xpose.msra.mxu0 0.0
        %1234 = vmatprep.subr.mxu0 0.0
        %1235 = vmatpush2.xpose.msra.mxu0 0.0
        %1236 = vmatprep.subr.mxu0 0.0
        %1237 = vmatpush2.xpose.msra.mxu0 0.0
        %1238 = vmatprep.subr.mxu0 0.0
        %1239 = vmatpush2.xpose.msra.mxu0 0.0
        %1240 = vmatprep.subr.mxu0 0.0
        %1241 = vmatpush2.xpose.msra.mxu0 0.0
        %1242 = vmatprep.subr.mxu0 0.0
        %1243 = vmatpush2.xpose.msra.mxu0 0.0
        %1244 = vmatprep.subr.mxu0 0.0
        %1245 = vmatpush2.xpose.msra.mxu0 0.0
        %1246 = vmatprep.subr.mxu0 0.0
        %1247 = vmatpush2.xpose.msra.mxu0 0.0
        %1248 = vmatprep.subr.mxu0 0.0
        %1249 = vmatpush2.xpose.msra.mxu0 0.0
        %1250 = vmatprep.subr.mxu0 0.0
        %1251 = vmatpush2.xpose.msra.mxu0 0.0
        %1252 = vmatprep.subr.mxu0 0.0
        %1253 = vmatpush2.xpose.msra.mxu0 0.0
        %1254 = vmatprep.subr.mxu0 0.0
        %1255 = vmatpush2.xpose.msra.mxu0 0.0
        %1256 = vmatprep.subr.mxu0 0.0
        %1257 = vmatpush2.xpose.msra.mxu0 0.0
        %1258 = vmatprep.subr.mxu0 0.0
        %1259 = vmatpush2.xpose.msra.mxu0 0.0
        %1260 = vmatprep.subr.mxu0 0.0
        %1261 = vmatpush2.xpose.msra.mxu0 0.0
        %1262 = vmatprep.subr.mxu0 0.0
        %1263 = vmatpush2.xpose.msra.mxu0 0.0
        %1264 = vmatprep.mubr.f32.mxu0 0.0
        %1265 = vmatmul.mubr.f32.gmra.mxu0 %v1198
        %v1266 = vpop.f32.mrf.mxu0
        %v1267 = vadd.f32 %v710, %v1266
        %v1268 = vpop.f32.mrf.mxu0
        %1269 = vdwg.mxu0
        %v1270 = vsel %vm787, %v1267, -inf
        %1271 = vmax.xlane.f32.xlu0 %v1270
        %v1272 = vpop.xlane.xlu0 %1271
        %v1273 = vsub.f32 %v1267, %v1272
        %v1274 = vmul.f32 %v1273, 1.442695
        %v1275 = vpow.pop %v1274
        %v1276 = vsel %vm787, %v1275, 0.0
        %1277 = vadd.xlane.f32.xlu0 %v1276
        %v1278 = vpop.xlane.xlu0 %1277
        %v1279 = vrcp.pop %v1278
        %v1280 = vmul.f32 %v1275, %v1279
        %v1282 = vsel %vm787, %v1280, 0
        %1284 = vmatprep.subr.mxu0 0.0
        %1285 = vmatpush1.msra.mxu0 0.0
        %1286 = vmatprep.subr.mxu0 0.0
        %1287 = vmatpush1.msra.mxu0 0.0
        %1288 = vmatprep.subr.mxu0 0.0
        %1289 = vmatpush1.msra.mxu0 0.0
        %1290 = vmatprep.subr.mxu0 0.0
        %1291 = vmatpush1.msra.mxu0 0.0
        %1292 = vmatprep.subr.mxu0 0.0
        %1293 = vmatpush1.msra.mxu0 0.0
        %1294 = vmatprep.subr.mxu0 0.0
        %1295 = vmatpush1.msra.mxu0 0.0
        %1296 = vmatprep.subr.mxu0 0.0
        %1297 = vmatpush1.msra.mxu0 0.0
        %1298 = vmatprep.subr.mxu0 0.0
        %1299 = vmatpush1.msra.mxu0 0.0
        %1300 = vmatprep.subr.mxu0 0.0
        %1301 = vmatpush1.msra.mxu0 0.0
        %1302 = vmatprep.subr.mxu0 0.0
        %1303 = vmatpush1.msra.mxu0 0.0
        %1304 = vmatprep.subr.mxu0 0.0
        %1305 = vmatpush1.msra.mxu0 0.0
        %1306 = vmatprep.subr.mxu0 0.0
        %1307 = vmatpush1.msra.mxu0 0.0
        %1308 = vmatprep.subr.mxu0 0.0
        %1309 = vmatpush1.msra.mxu0 0.0
        %1310 = vmatprep.subr.mxu0 0.0
        %1311 = vmatpush1.msra.mxu0 0.0
        %1312 = vmatprep.subr.mxu0 0.0
        %1313 = vmatpush1.msra.mxu0 0.0
        %1314 = vmatprep.subr.mxu0 0.0
        %1315 = vmatpush1.msra.mxu0 %v1121
        %1316 = vmatprep.subr.mxu0 0.0
        %1317 = vmatpush2.msra.mxu0 0.0
        %1318 = vmatprep.subr.mxu0 0.0
        %1319 = vmatpush2.msra.mxu0 0.0
        %1320 = vmatprep.subr.mxu0 0.0
        %1321 = vmatpush2.msra.mxu0 0.0
        %1322 = vmatprep.subr.mxu0 0.0
        %1323 = vmatpush2.msra.mxu0 0.0
        %1324 = vmatprep.subr.mxu0 0.0
        %1325 = vmatpush2.msra.mxu0 0.0
        %1326 = vmatprep.subr.mxu0 0.0
        %1327 = vmatpush2.msra.mxu0 0.0
        %1328 = vmatprep.subr.mxu0 0.0
        %1329 = vmatpush2.msra.mxu0 0.0
        %1330 = vmatprep.subr.mxu0 0.0
        %1331 = vmatpush2.msra.mxu0 0.0
        %1332 = vmatprep.subr.mxu0 0.0
        %1333 = vmatpush2.msra.mxu0 0.0
        %1334 = vmatprep.subr.mxu0 0.0
        %1335 = vmatpush2.msra.mxu0 0.0
        %1336 = vmatprep.subr.mxu0 0.0
        %1337 = vmatpush2.msra.mxu0 0.0
        %1338 = vmatprep.subr.mxu0 0.0
        %1339 = vmatpush2.msra.mxu0 0.0
        %1340 = vmatprep.subr.mxu0 0.0
        %1341 = vmatpush2.msra.mxu0 0.0
        %1342 = vmatprep.subr.mxu0 0.0
        %1343 = vmatpush2.msra.mxu0 0.0
        %1344 = vmatprep.subr.mxu0 0.0
        %1345 = vmatpush2.msra.mxu0 0.0
        %1346 = vmatprep.subr.mxu0 0.0
        %1347 = vmatpush2.msra.mxu0 0.0
        %1348 = vmatprep.mubr.f32.mxu0 0.0
        %1349 = vmatmul.mubr.f32.gmra.mxu0 %v1282
        %v1350 = vpop.f32.mrf.mxu0
        %v1351 = vadd.f32 0.0, %v1350
        %v1352 = vpop.f32.mrf.mxu0
        %1353 = vdwg.mxu0
        %1355 = vrot.lane.b32.xlu0 %v1027, 32
        %v1356 = vpop.permute.xlu0 %1355
        %1359 = vrot.lane.b32.xlu0 %v1193, 64
        %v1360 = vpop.permute.xlu0 %1359
        %1363 = vrot.lane.b32.xlu0 %v1351, 96
        %v1364 = vpop.permute.xlu0 %1363
        %v1366 = vsel %vm672, %v869, %v1356
        %v1367 = vsel %vm674, %v1366, %v1360
        %v1368 = vsel %vm676, %v1367, %v1364
        %v1369 = vld [vmem:[%s7] sm:$0xff]
        %v1370 = vld [vmem:[%s7 + $0x8] sm:$0xff]
        %v1371 = vld [vmem:[%s7 + $0x10] sm:$0xff]
        %v1372 = vld [vmem:[%s7 + $0x18] sm:$0xff]
        %v1373 = vld [vmem:[%s7 + $0x20] sm:$0xff]
        %v1374 = vld [vmem:[%s7 + $0x28] sm:$0xff]
        %v1375 = vld [vmem:[%s7 + $0x30] sm:$0xff]
        %v1376 = vld [vmem:[%s7 + $0x38] sm:$0xff]
        %v1377 = vld [vmem:[%s7 + $0x40] sm:$0xff]
        %v1378 = vld [vmem:[%s7 + $0x48] sm:$0xff]
        %v1379 = vld [vmem:[%s7 + $0x50] sm:$0xff]
        %v1380 = vld [vmem:[%s7 + $0x58] sm:$0xff]
        %v1381 = vld [vmem:[%s7 + $0x60] sm:$0xff]
        %v1382 = vld [vmem:[%s7 + $0x68] sm:$0xff]
        %v1383 = vld [vmem:[%s7 + $0x70] sm:$0xff]
        %v1384 = vld [vmem:[%s7 + $0x78] sm:$0xff]
        %1385 = vmatprep.subr.mxu0 0.0
        %1386 = vmatpush1.msra.mxu0 %v1384
        %1387 = vmatprep.subr.mxu0 0.0
        %1388 = vmatpush1.msra.mxu0 %v1383
        %1389 = vmatprep.subr.mxu0 0.0
        %1390 = vmatpush1.msra.mxu0 %v1382
        %1391 = vmatprep.subr.mxu0 0.0
        %1392 = vmatpush1.msra.mxu0 %v1381
        %1393 = vmatprep.subr.mxu0 0.0
        %1394 = vmatpush1.msra.mxu0 %v1380
        %1395 = vmatprep.subr.mxu0 0.0
        %1396 = vmatpush1.msra.mxu0 %v1379
        %1397 = vmatprep.subr.mxu0 0.0
        %1398 = vmatpush1.msra.mxu0 %v1378
        %1399 = vmatprep.subr.mxu0 0.0
        %1400 = vmatpush1.msra.mxu0 %v1377
        %1401 = vmatprep.subr.mxu0 0.0
        %1402 = vmatpush1.msra.mxu0 %v1376
        %1403 = vmatprep.subr.mxu0 0.0
        %1404 = vmatpush1.msra.mxu0 %v1375
        %1405 = vmatprep.subr.mxu0 0.0
        %1406 = vmatpush1.msra.mxu0 %v1374
        %1407 = vmatprep.subr.mxu0 0.0
        %1408 = vmatpush1.msra.mxu0 %v1373
        %1409 = vmatprep.subr.mxu0 0.0
        %1410 = vmatpush1.msra.mxu0 %v1372
        %1411 = vmatprep.subr.mxu0 0.0
        %1412 = vmatpush1.msra.mxu0 %v1371
        %1413 = vmatprep.subr.mxu0 0.0
        %1414 = vmatpush1.msra.mxu0 %v1370
        %1415 = vmatprep.subr.mxu0 0.0
        %1416 = vmatpush1.msra.mxu0 %v1369
        %1417 = vmatprep.subr.mxu0 0.0
        %1418 = vmatpush2.msra.mxu0 0.0
        %1419 = vmatprep.subr.mxu0 0.0
        %1420 = vmatpush2.msra.mxu0 0.0
        %1421 = vmatprep.subr.mxu0 0.0
        %1422 = vmatpush2.msra.mxu0 0.0
        %1423 = vmatprep.subr.mxu0 0.0
        %1424 = vmatpush2.msra.mxu0 0.0
        %1425 = vmatprep.subr.mxu0 0.0
        %1426 = vmatpush2.msra.mxu0 0.0
        %1427 = vmatprep.subr.mxu0 0.0
        %1428 = vmatpush2.msra.mxu0 0.0
        %1429 = vmatprep.subr.mxu0 0.0
        %1430 = vmatpush2.msra.mxu0 0.0
        %1431 = vmatprep.subr.mxu0 0.0
        %1432 = vmatpush2.msra.mxu0 0.0
        %1433 = vmatprep.subr.mxu0 0.0
        %1434 = vmatpush2.msra.mxu0 0.0
        %1435 = vmatprep.subr.mxu0 0.0
        %1436 = vmatpush2.msra.mxu0 0.0
        %1437 = vmatprep.subr.mxu0 0.0
        %1438 = vmatpush2.msra.mxu0 0.0
        %1439 = vmatprep.subr.mxu0 0.0
        %1440 = vmatpush2.msra.mxu0 0.0
        %1441 = vmatprep.subr.mxu0 0.0
        %1442 = vmatpush2.msra.mxu0 0.0
        %1443 = vmatprep.subr.mxu0 0.0
        %1444 = vmatpush2.msra.mxu0 0.0
        %1445 = vmatprep.subr.mxu0 0.0
        %1446 = vmatpush2.msra.mxu0 0.0
        %1447 = vmatprep.subr.mxu0 0.0
        %1448 = vmatpush2.msra.mxu0 0.0
        %1449 = vmatprep.mubr.f32.mxu0 0.0
        %1450 = vmatmul.mubr.f32.gmra.mxu0 %v1368
        %v1451 = vpop.f32.mrf.mxu0
        %v1452 = vadd.f32 0.0, %v1451
        %v1453 = vpop.f32.mrf.mxu0
        %1454 = vdwg.mxu0
        %v1455 = vadd.f32 %v437, %v1452
        %v1456 = vmul.f32 %v1455, %v1455
        %1457 = vadd.xlane.f32.xlu0 %v1456
        %v1458 = vpop.xlane.xlu0 %1457
        %v1459 = vmul.f32 %v1458, %v441
        %v1460 = vadd.f32 %v1459, 1e-06
        %v1461 = vrsqrt.pop %v1460
        %v1462 = vmul.f32 %v1455, %v1461
        %v1463 = vld [vmem:[%s8] sm:$0x1]
        %v1465 = vlaneseq
        %v1466 = vshrl.u32 %v1465, 7
        %v1467 = vsub.s32 0, %v1466
        %v1468 = vrot.slane %v1463, %v1467
        %v1470 = vmul.f32 %v1462, %v1468
        %v1471 = vld [vmem:[%s9] sm:$0xff]
        %v1472 = vld [vmem:[%s9 + $0x8] sm:$0xff]
        %v1473 = vld [vmem:[%s9 + $0x10] sm:$0xff]
        %v1474 = vld [vmem:[%s9 + $0x18] sm:$0xff]
        %v1475 = vld [vmem:[%s9 + $0x20] sm:$0xff]
        %v1476 = vld [vmem:[%s9 + $0x28] sm:$0xff]
        %v1477 = vld [vmem:[%s9 + $0x30] sm:$0xff]
        %v1478 = vld [vmem:[%s9 + $0x38] sm:$0xff]
        %v1479 = vld [vmem:[%s9 + $0x40] sm:$0xff]
        %v1480 = vld [vmem:[%s9 + $0x48] sm:$0xff]
        %v1481 = vld [vmem:[%s9 + $0x50] sm:$0xff]
        %v1482 = vld [vmem:[%s9 + $0x58] sm:$0xff]
        %v1483 = vld [vmem:[%s9 + $0x60] sm:$0xff]
        %v1484 = vld [vmem:[%s9 + $0x68] sm:$0xff]
        %v1485 = vld [vmem:[%s9 + $0x70] sm:$0xff]
        %v1486 = vld [vmem:[%s9 + $0x78] sm:$0xff]
        %v1487 = vld [vmem:[%s9 + $0x80] sm:$0xff]
        %v1488 = vld [vmem:[%s9 + $0x88] sm:$0xff]
        %v1489 = vld [vmem:[%s9 + $0x90] sm:$0xff]
        %v1490 = vld [vmem:[%s9 + $0x98] sm:$0xff]
        %v1491 = vld [vmem:[%s9 + $0xa0] sm:$0xff]
        %v1492 = vld [vmem:[%s9 + $0xa8] sm:$0xff]
        %v1493 = vld [vmem:[%s9 + $0xb0] sm:$0xff]
        %v1494 = vld [vmem:[%s9 + $0xb8] sm:$0xff]
        %v1495 = vld [vmem:[%s9 + $0xc0] sm:$0xff]
        %v1496 = vld [vmem:[%s9 + $0xc8] sm:$0xff]
        %v1497 = vld [vmem:[%s9 + $0xd0] sm:$0xff]
        %v1498 = vld [vmem:[%s9 + $0xd8] sm:$0xff]
        %v1499 = vld [vmem:[%s9 + $0xe0] sm:$0xff]
        %v1500 = vld [vmem:[%s9 + $0xe8] sm:$0xff]
        %v1501 = vld [vmem:[%s9 + $0xf0] sm:$0xff]
        %v1502 = vld [vmem:[%s9 + $0xf8] sm:$0xff]
        %v1503 = vld [vmem:[%s9 + $0x100] sm:$0xff]
        %v1504 = vld [vmem:[%s9 + $0x108] sm:$0xff]
        %v1505 = vld [vmem:[%s9 + $0x110] sm:$0xff]
        %v1506 = vld [vmem:[%s9 + $0x118] sm:$0xff]
        %v1507 = vld [vmem:[%s9 + $0x120] sm:$0xff]
        %v1508 = vld [vmem:[%s9 + $0x128] sm:$0xff]
        %v1509 = vld [vmem:[%s9 + $0x130] sm:$0xff]
        %v1510 = vld [vmem:[%s9 + $0x138] sm:$0xff]
        %v1511 = vld [vmem:[%s9 + $0x140] sm:$0xff]
        %v1512 = vld [vmem:[%s9 + $0x148] sm:$0xff]
        %v1513 = vld [vmem:[%s9 + $0x150] sm:$0xff]
        %v1514 = vld [vmem:[%s9 + $0x158] sm:$0xff]
        %v1515 = vld [vmem:[%s9 + $0x160] sm:$0xff]
        %v1516 = vld [vmem:[%s9 + $0x168] sm:$0xff]
        %v1517 = vld [vmem:[%s9 + $0x170] sm:$0xff]
        %v1518 = vld [vmem:[%s9 + $0x178] sm:$0xff]
        %v1519 = vld [vmem:[%s9 + $0x180] sm:$0xff]
        %v1520 = vld [vmem:[%s9 + $0x188] sm:$0xff]
        %v1521 = vld [vmem:[%s9 + $0x190] sm:$0xff]
        %v1522 = vld [vmem:[%s9 + $0x198] sm:$0xff]
        %v1523 = vld [vmem:[%s9 + $0x1a0] sm:$0xff]
        %v1524 = vld [vmem:[%s9 + $0x1a8] sm:$0xff]
        %v1525 = vld [vmem:[%s9 + $0x1b0] sm:$0xff]
        %v1526 = vld [vmem:[%s9 + $0x1b8] sm:$0xff]
        %v1527 = vld [vmem:[%s9 + $0x1c0] sm:$0xff]
        %v1528 = vld [vmem:[%s9 + $0x1c8] sm:$0xff]
        %v1529 = vld [vmem:[%s9 + $0x1d0] sm:$0xff]
        %v1530 = vld [vmem:[%s9 + $0x1d8] sm:$0xff]
        %v1531 = vld [vmem:[%s9 + $0x1e0] sm:$0xff]
        %v1532 = vld [vmem:[%s9 + $0x1e8] sm:$0xff]
        %v1533 = vld [vmem:[%s9 + $0x1f0] sm:$0xff]
        %v1534 = vld [vmem:[%s9 + $0x1f8] sm:$0xff]
        %1535 = vmatprep.subr.mxu0 %v1532
        %1536 = vmatpush1.msra.mxu0 %v1531
        %1537 = vmatprep.subr.mxu0 %v1528
        %1538 = vmatpush1.msra.mxu0 %v1527
        %1539 = vmatprep.subr.mxu0 %v1524
        %1540 = vmatpush1.msra.mxu0 %v1523
        %1541 = vmatprep.subr.mxu0 %v1520
        %1542 = vmatpush1.msra.mxu0 %v1519
        %1543 = vmatprep.subr.mxu0 %v1516
        %1544 = vmatpush1.msra.mxu0 %v1515
        %1545 = vmatprep.subr.mxu0 %v1512
        %1546 = vmatpush1.msra.mxu0 %v1511
        %1547 = vmatprep.subr.mxu0 %v1508
        %1548 = vmatpush1.msra.mxu0 %v1507
        %1549 = vmatprep.subr.mxu0 %v1504
        %1550 = vmatpush1.msra.mxu0 %v1503
        %1551 = vmatprep.subr.mxu0 %v1500
        %1552 = vmatpush1.msra.mxu0 %v1499
        %1553 = vmatprep.subr.mxu0 %v1496
        %1554 = vmatpush1.msra.mxu0 %v1495
        %1555 = vmatprep.subr.mxu0 %v1492
        %1556 = vmatpush1.msra.mxu0 %v1491
        %1557 = vmatprep.subr.mxu0 %v1488
        %1558 = vmatpush1.msra.mxu0 %v1487
        %1559 = vmatprep.subr.mxu0 %v1484
        %1560 = vmatpush1.msra.mxu0 %v1483
        %1561 = vmatprep.subr.mxu0 %v1480
        %1562 = vmatpush1.msra.mxu0 %v1479
        %1563 = vmatprep.subr.mxu0 %v1476
        %1564 = vmatpush1.msra.mxu0 %v1475
        %1565 = vmatprep.subr.mxu0 %v1472
        %1566 = vmatpush1.msra.mxu0 %v1471
        %1567 = vmatprep.subr.mxu0 0.0
        %1568 = vmatpush2.msra.mxu0 0.0
        %1569 = vmatprep.subr.mxu0 0.0
        %1570 = vmatpush2.msra.mxu0 0.0
        %1571 = vmatprep.subr.mxu0 0.0
        %1572 = vmatpush2.msra.mxu0 0.0
        %1573 = vmatprep.subr.mxu0 0.0
        %1574 = vmatpush2.msra.mxu0 0.0
        %1575 = vmatprep.subr.mxu0 0.0
        %1576 = vmatpush2.msra.mxu0 0.0
        %1577 = vmatprep.subr.mxu0 0.0
        %1578 = vmatpush2.msra.mxu0 0.0
        %1579 = vmatprep.subr.mxu0 0.0
        %1580 = vmatpush2.msra.mxu0 0.0
        %1581 = vmatprep.subr.mxu0 0.0
        %1582 = vmatpush2.msra.mxu0 0.0
        %1583 = vmatprep.subr.mxu0 0.0
        %1584 = vmatpush2.msra.mxu0 0.0
        %1585 = vmatprep.subr.mxu0 0.0
        %1586 = vmatpush2.msra.mxu0 0.0
        %1587 = vmatprep.subr.mxu0 0.0
        %1588 = vmatpush2.msra.mxu0 0.0
        %1589 = vmatprep.subr.mxu0 0.0
        %1590 = vmatpush2.msra.mxu0 0.0
        %1591 = vmatprep.subr.mxu0 0.0
        %1592 = vmatpush2.msra.mxu0 0.0
        %1593 = vmatprep.subr.mxu0 0.0
        %1594 = vmatpush2.msra.mxu0 0.0
        %1595 = vmatprep.subr.mxu0 0.0
        %1596 = vmatpush2.msra.mxu0 0.0
        %1597 = vmatprep.subr.mxu0 0.0
        %1598 = vmatpush2.msra.mxu0 0.0
        %1599 = vmatprep.mubr.f32.mxu0 0.0
        %1600 = vmatmul.mubr.f32.gmra.mxu0 %v1470
        %v1601 = vpop.f32.mrf.mxu0
        %v1602 = vadd.f32 0.0, %v1601
        %v1603 = vpop.f32.mrf.mxu0
        %v1604 = vadd.f32 0.0, %v1603
        %1605 = vdwg.mxu0
        %1606 = vmatprep.subr.mxu0 %v1534
        %1607 = vmatpush1.msra.mxu0 %v1533
        %1608 = vmatprep.subr.mxu0 %v1530
        %1609 = vmatpush1.msra.mxu0 %v1529
        %1610 = vmatprep.subr.mxu0 %v1526
        %1611 = vmatpush1.msra.mxu0 %v1525
        %1612 = vmatprep.subr.mxu0 %v1522
        %1613 = vmatpush1.msra.mxu0 %v1521
        %1614 = vmatprep.subr.mxu0 %v1518
        %1615 = vmatpush1.msra.mxu0 %v1517
        %1616 = vmatprep.subr.mxu0 %v1514
        %1617 = vmatpush1.msra.mxu0 %v1513
        %1618 = vmatprep.subr.mxu0 %v1510
        %1619 = vmatpush1.msra.mxu0 %v1509
        %1620 = vmatprep.subr.mxu0 %v1506
        %1621 = vmatpush1.msra.mxu0 %v1505
        %1622 = vmatprep.subr.mxu0 %v1502
        %1623 = vmatpush1.msra.mxu0 %v1501
        %1624 = vmatprep.subr.mxu0 %v1498
        %1625 = vmatpush1.msra.mxu0 %v1497
        %1626 = vmatprep.subr.mxu0 %v1494
        %1627 = vmatpush1.msra.mxu0 %v1493
        %1628 = vmatprep.subr.mxu0 %v1490
        %1629 = vmatpush1.msra.mxu0 %v1489
        %1630 = vmatprep.subr.mxu0 %v1486
        %1631 = vmatpush1.msra.mxu0 %v1485
        %1632 = vmatprep.subr.mxu0 %v1482
        %1633 = vmatpush1.msra.mxu0 %v1481
        %1634 = vmatprep.subr.mxu0 %v1478
        %1635 = vmatpush1.msra.mxu0 %v1477
        %1636 = vmatprep.subr.mxu0 %v1474
        %1637 = vmatpush1.msra.mxu0 %v1473
        %1638 = vmatprep.subr.mxu0 0.0
        %1639 = vmatpush2.msra.mxu0 0.0
        %1640 = vmatprep.subr.mxu0 0.0
        %1641 = vmatpush2.msra.mxu0 0.0
        %1642 = vmatprep.subr.mxu0 0.0
        %1643 = vmatpush2.msra.mxu0 0.0
        %1644 = vmatprep.subr.mxu0 0.0
        %1645 = vmatpush2.msra.mxu0 0.0
        %1646 = vmatprep.subr.mxu0 0.0
        %1647 = vmatpush2.msra.mxu0 0.0
        %1648 = vmatprep.subr.mxu0 0.0
        %1649 = vmatpush2.msra.mxu0 0.0
        %1650 = vmatprep.subr.mxu0 0.0
        %1651 = vmatpush2.msra.mxu0 0.0
        %1652 = vmatprep.subr.mxu0 0.0
        %1653 = vmatpush2.msra.mxu0 0.0
        %1654 = vmatprep.subr.mxu0 0.0
        %1655 = vmatpush2.msra.mxu0 0.0
        %1656 = vmatprep.subr.mxu0 0.0
        %1657 = vmatpush2.msra.mxu0 0.0
        %1658 = vmatprep.subr.mxu0 0.0
        %1659 = vmatpush2.msra.mxu0 0.0
        %1660 = vmatprep.subr.mxu0 0.0
        %1661 = vmatpush2.msra.mxu0 0.0
        %1662 = vmatprep.subr.mxu0 0.0
        %1663 = vmatpush2.msra.mxu0 0.0
        %1664 = vmatprep.subr.mxu0 0.0
        %1665 = vmatpush2.msra.mxu0 0.0
        %1666 = vmatprep.subr.mxu0 0.0
        %1667 = vmatpush2.msra.mxu0 0.0
        %1668 = vmatprep.subr.mxu0 0.0
        %1669 = vmatpush2.msra.mxu0 0.0
        %1670 = vmatprep.mubr.f32.mxu0 0.0
        %1671 = vmatmul.mubr.f32.gmra.mxu0 %v1470
        %v1672 = vpop.f32.mrf.mxu0
        %v1673 = vadd.f32 0.0, %v1672
        %v1674 = vpop.f32.mrf.mxu0
        %v1675 = vadd.f32 0.0, %v1674
        %1676 = vdwg.mxu0
        %v1677 = vxor.u32 %v1602, 2147483648
        %v1678 = vxor.u32 %v1604, 2147483648
        %v1679 = vmul.f32 %v1677, 1.442695
        %v1680 = vpow.pop %v1679
        %v1681 = vmul.f32 %v1678, 1.442695
        %v1682 = vpow.pop %v1681
        %v1683 = vadd.f32 %v1680, 1.0
        %v1684 = vadd.f32 %v1682, 1.0
        %v1685 = vrcp.pop %v1683
        %v1686 = vmul.f32 1.0, %v1685
        %v1687 = vrcp.pop %v1684
        %v1688 = vmul.f32 1.0, %v1687
        %v1689 = vmul.f32 %v1602, %v1686
        %v1690 = vmul.f32 %v1604, %v1688
        %v1691 = vmul.f32 %v1689, %v1673
        %v1692 = vmul.f32 %v1690, %v1675
        %v1693 = vld [vmem:[%s10] sm:$0xff]
        %v1694 = vld [vmem:[%s10 + $0x8] sm:$0xff]
        %v1695 = vld [vmem:[%s10 + $0x10] sm:$0xff]
        %v1696 = vld [vmem:[%s10 + $0x18] sm:$0xff]
        %v1697 = vld [vmem:[%s10 + $0x20] sm:$0xff]
        %v1698 = vld [vmem:[%s10 + $0x28] sm:$0xff]
        %v1699 = vld [vmem:[%s10 + $0x30] sm:$0xff]
        %v1700 = vld [vmem:[%s10 + $0x38] sm:$0xff]
        %v1701 = vld [vmem:[%s10 + $0x40] sm:$0xff]
        %v1702 = vld [vmem:[%s10 + $0x48] sm:$0xff]
        %v1703 = vld [vmem:[%s10 + $0x50] sm:$0xff]
        %v1704 = vld [vmem:[%s10 + $0x58] sm:$0xff]
        %v1705 = vld [vmem:[%s10 + $0x60] sm:$0xff]
        %v1706 = vld [vmem:[%s10 + $0x68] sm:$0xff]
        %v1707 = vld [vmem:[%s10 + $0x70] sm:$0xff]
        %v1708 = vld [vmem:[%s10 + $0x78] sm:$0xff]
        %v1709 = vld [vmem:[%s10 + $0x80] sm:$0xff]
        %v1710 = vld [vmem:[%s10 + $0x88] sm:$0xff]
        %v1711 = vld [vmem:[%s10 + $0x90] sm:$0xff]
        %v1712 = vld [vmem:[%s10 + $0x98] sm:$0xff]
        %v1713 = vld [vmem:[%s10 + $0xa0] sm:$0xff]
        %v1714 = vld [vmem:[%s10 + $0xa8] sm:$0xff]
        %v1715 = vld [vmem:[%s10 + $0xb0] sm:$0xff]
        %v1716 = vld [vmem:[%s10 + $0xb8] sm:$0xff]
        %v1717 = vld [vmem:[%s10 + $0xc0] sm:$0xff]
        %v1718 = vld [vmem:[%s10 + $0xc8] sm:$0xff]
        %v1719 = vld [vmem:[%s10 + $0xd0] sm:$0xff]
        %v1720 = vld [vmem:[%s10 + $0xd8] sm:$0xff]
        %v1721 = vld [vmem:[%s10 + $0xe0] sm:$0xff]
        %v1722 = vld [vmem:[%s10 + $0xe8] sm:$0xff]
        %v1723 = vld [vmem:[%s10 + $0xf0] sm:$0xff]
        %v1724 = vld [vmem:[%s10 + $0xf8] sm:$0xff]
        %1725 = vmatprep.subr.mxu0 0.0
        %1726 = vmatpush1.msra.mxu0 %v1708
        %1727 = vmatprep.subr.mxu0 0.0
        %1728 = vmatpush1.msra.mxu0 %v1707
        %1729 = vmatprep.subr.mxu0 0.0
        %1730 = vmatpush1.msra.mxu0 %v1706
        %1731 = vmatprep.subr.mxu0 0.0
        %1732 = vmatpush1.msra.mxu0 %v1705
        %1733 = vmatprep.subr.mxu0 0.0
        %1734 = vmatpush1.msra.mxu0 %v1704
        %1735 = vmatprep.subr.mxu0 0.0
        %1736 = vmatpush1.msra.mxu0 %v1703
        %1737 = vmatprep.subr.mxu0 0.0
        %1738 = vmatpush1.msra.mxu0 %v1702
        %1739 = vmatprep.subr.mxu0 0.0
        %1740 = vmatpush1.msra.mxu0 %v1701
        %1741 = vmatprep.subr.mxu0 0.0
        %1742 = vmatpush1.msra.mxu0 %v1700
        %1743 = vmatprep.subr.mxu0 0.0
        %1744 = vmatpush1.msra.mxu0 %v1699
        %1745 = vmatprep.subr.mxu0 0.0
        %1746 = vmatpush1.msra.mxu0 %v1698
        %1747 = vmatprep.subr.mxu0 0.0
        %1748 = vmatpush1.msra.mxu0 %v1697
        %1749 = vmatprep.subr.mxu0 0.0
        %1750 = vmatpush1.msra.mxu0 %v1696
        %1751 = vmatprep.subr.mxu0 0.0
        %1752 = vmatpush1.msra.mxu0 %v1695
        %1753 = vmatprep.subr.mxu0 0.0
        %1754 = vmatpush1.msra.mxu0 %v1694
        %1755 = vmatprep.subr.mxu0 0.0
        %1756 = vmatpush1.msra.mxu0 %v1693
        %1757 = vmatprep.subr.mxu0 0.0
        %1758 = vmatpush2.msra.mxu0 %v1724
        %1759 = vmatprep.subr.mxu0 0.0
        %1760 = vmatpush2.msra.mxu0 %v1723
        %1761 = vmatprep.subr.mxu0 0.0
        %1762 = vmatpush2.msra.mxu0 %v1722
        %1763 = vmatprep.subr.mxu0 0.0
        %1764 = vmatpush2.msra.mxu0 %v1721
        %1765 = vmatprep.subr.mxu0 0.0
        %1766 = vmatpush2.msra.mxu0 %v1720
        %1767 = vmatprep.subr.mxu0 0.0
        %1768 = vmatpush2.msra.mxu0 %v1719
        %1769 = vmatprep.subr.mxu0 0.0
        %1770 = vmatpush2.msra.mxu0 %v1718
        %1771 = vmatprep.subr.mxu0 0.0
        %1772 = vmatpush2.msra.mxu0 %v1717
        %1773 = vmatprep.subr.mxu0 0.0
        %1774 = vmatpush2.msra.mxu0 %v1716
        %1775 = vmatprep.subr.mxu0 0.0
        %1776 = vmatpush2.msra.mxu0 %v1715
        %1777 = vmatprep.subr.mxu0 0.0
        %1778 = vmatpush2.msra.mxu0 %v1714
        %1779 = vmatprep.subr.mxu0 0.0
        %1780 = vmatpush2.msra.mxu0 %v1713
        %1781 = vmatprep.subr.mxu0 0.0
        %1782 = vmatpush2.msra.mxu0 %v1712
        %1783 = vmatprep.subr.mxu0 0.0
        %1784 = vmatpush2.msra.mxu0 %v1711
        %1785 = vmatprep.subr.mxu0 0.0
        %1786 = vmatpush2.msra.mxu0 %v1710
        %1787 = vmatprep.subr.mxu0 0.0
        %1788 = vmatpush2.msra.mxu0 %v1709
        %1789 = vmatprep.mubr.f32.mxu0 %v1692
        %1790 = vmatmul.mubr.f32.gmra.mxu0 %v1691
        %v1791 = vpop.f32.mrf.mxu0
        %v1792 = vadd.f32 0.0, %v1791
        %v1793 = vpop.f32.mrf.mxu0
        %1794 = vdwg.mxu0
        %v1795 = vld [vmem:[%s432] sm:$0xff]
        %1797 = vset.pattern.permute.xlu0 0
        %1798 = vperm.xlu0 %1797, %v1795
        %v1799 = vpop.permute.xlu0 %1798
        %v1801 = vmul.f32 %v1799, %v1792
        %v1802 = vadd.f32 %v1455, %v1801
        %1803 = vst [vmem:[%s418] sm:$0xff] %v1802
        %v1804 = vadd.f32 %v1455, %v1792
        %v1805 = vmul.f32 %v1455, %v1804
        %1806 = vadd.xlane.f32.xlu0 %v1805
        %v1807 = vpop.xlane.xlu0 %1806
        %v1808 = vrsqrt.pop %v1458
        %v1809 = vmul.f32 %v1458, %v1808
        %vm1810 = vcmp.eq.f32.partialorder %v1458, inf
        %v1811 = vsel %vm1810, %v1458, %v1809
        %vm1812 = vcmp.eq.f32.partialorder %v1458, 0.0
        %v1813 = vand.u32 %v1458, 2147483648
        %v1814 = vsel %vm1812, %v1813, %v1811
        %v1815 = vmul.f32 %v1804, %v1804
        %1816 = vadd.xlane.f32.xlu0 %v1815
        %v1817 = vpop.xlane.xlu0 %1816
        %v1818 = vrsqrt.pop %v1817
        %v1819 = vmul.f32 %v1817, %v1818
        %vm1820 = vcmp.eq.f32.partialorder %v1817, inf
        %v1821 = vsel %vm1820, %v1817, %v1819
        %vm1822 = vcmp.eq.f32.partialorder %v1817, 0.0
        %v1823 = vand.u32 %v1817, 2147483648
        %v1824 = vsel %vm1822, %v1823, %v1821
        %v1825 = vmax.f32 %v1814, 1e-08
        %v1826 = vmax.f32 %v1824, 1e-08
        %v1827 = vmul.f32 %v1825, %v1826
        %v1828 = vrcp.pop %v1827
        %v1829 = vmul.f32 %v1807, %v1828
        %vm1830 = vcmask 7168
        %1831 = vst.msk [vmem:[%s436] sm:$0xff] %vm1830, %v1829
        %s1832 = sand.u32 %s276, 1
        %s1833 = scalar_lea.sflag [#allocation3], %s1832
        %s1834 = sand.u32 %s276, 1
        %s1835 = smul.addr %s1834, 8
        %s1836 = scalar_lea.vmem [#allocation2], %s1835
        %p1837 = scmp.lt.s32.totalorder %s27, 1
        %s1838 = scalar_select %p1837, %s27, 1
        %s1839 = smul.addr %s1838, 8
        %s1840 = scalar_lea.vmem %s12, %s1839
        // Predicated region
        $region65: #{_lambda_.1} parent=63 // pred_check
          %p1841 = pneg %p286
        $region66: #{_lambda_.1} parent=63 // pred_check_branch
          %1843 = sbr.rel (%p1841) target = $region68
        $region67: #{_lambda_.1} parent=63 // pred_region
          %s1845 = ssub.s32 128, 128
          %1846 = vsyncadd %s1833, %s1845
          %s1847 = smul.addr %s27, 128
          %s1848 = scalar_lea.hbm %s11, %s1847
          %s1850 = sshll.u32 %s1836, 4
          %s1851 = int_to_ptr.vmem [resolvable:$true] %s1850
          %1853 = dma.vmem_to_hbm [thread:$0]  %s1851, 128, %s1848, %s1833
        $region68: #{_lambda_.1} parent=63 // pred_fallthru
          _
        // Predicated region
        $region69: #{_lambda_.1} parent=63 // pred_check
          %p1854 = pneg %p312
        $region70: #{_lambda_.1} parent=63 // pred_check_branch
          %1856 = sbr.rel (%p1854) target = $region72
        $region71: #{_lambda_.1} parent=63 // pred_region
          _
        $region72: #{_lambda_.1} parent=63 // pred_fallthru
          _
      $region64: #{_lambda_.1} parent=5 // pred_fallthru
        _
      %p1857 = scmp.le.s32.totalorder 2, %s22
      // Predicated region
      $region73: #{_lambda_.1} parent=5 // pred_check
        %p1858 = pneg %p1857
      $region74: #{_lambda_.1} parent=5 // pred_check_branch
        %1860 = sbr.rel (%p1858) target = $region76
      $region75: #{_lambda_.1} parent=5 // pred_region
        %s1861 = ssub.s32 %s22, 2
        // Predicated region
        $region77: #{_lambda_.1} parent=75 // pred_check
          %p1862 = pneg %p292
        $region78: #{_lambda_.1} parent=75 // pred_check_branch
          %1864 = sbr.rel (%p1862) target = $region80
        $region79: #{_lambda_.1} parent=75 // pred_region
          %s1865 = sand.u32 %s277, 1
          %s1866 = scalar_lea.sflag [#allocation3], %s1865
          %s1867 = sand.u32 %s277, 1
          %s1868 = smul.addr %s1867, 8
          %s1869 = scalar_lea.vmem [#allocation2], %s1868
          %1870 = dma.done %s1866, 128
        $region80: #{_lambda_.1} parent=75 // pred_fallthru
          _
        // Predicated region
        $region81: #{_lambda_.1} parent=75 // pred_check
          %p1871 = pneg %p318
        $region82: #{_lambda_.1} parent=75 // pred_check_branch
          %1873 = sbr.rel (%p1871) target = $region84
        $region83: #{_lambda_.1} parent=75 // pred_region
          %p1874 = scmp.lt.s32.totalorder %s28, 1
          %s1875 = scalar_select %p1874, %s28, 1
          %s1876 = smul.addr %s1875, 8
          %s1877 = scalar_lea.vmem %s12, %s1876
        $region84: #{_lambda_.1} parent=75 // pred_fallthru
          _
      $region76: #{_lambda_.1} parent=5 // pred_fallthru
        _
    $region6: #{_lambda_.1} parent=1 // loop_footer
      %s26 = sadd.s32 1, %s22
    $region7: #{_lambda_.1} parent=1 // loop_footer_branch
      %21 = sbr.rel target = $region3
    $region8: #{_lambda_.1} parent=1 // loop_exit
      _
    %1878 = vsyncpa [#allocation3], 1
    %s1879 = scalar_lea.sflag [#allocation3], 1
    %1880 = vsyncpa %s1879, 1

</llo_original>
